<compile_context>
chip_gen: v5e
topology: v5e:2x2
jax: 0.10.0
libtpu: 0.0.40
codegen_flags: <defaults>
</compile_context>

<pallas_src>
import functools

import jax
import jax.numpy as jnp
from jax import lax
from jax.experimental import pallas as pl
from jax.experimental.pallas import tpu as pltpu


# ----------------------------- Pallas kernels ------------------------------

def _encoder_kernel(patches_ref, wconv_ref, w1_ref, b1_ref, g_ref, beta_ref,
                    w2_ref, b2_ref, proj_ref, feat_sc):
    """conv1+ReLU+global-avg-pool accumulated over the batch grid axis, then
    the projection MLP (Linear -> BN(train) -> ReLU -> Linear) at the last
    batch step of each (model, view) combination."""
    b = pl.program_id(2)
    nb = pl.num_programs(2)

    # conv1 as an im2col matmul: (HW, K) bf16 @ (K, Cout) bf16 -> f32, + ReLU
    conv = jnp.dot(patches_ref[...], wconv_ref[...],
                   preferred_element_type=jnp.float32)
    conv = jnp.maximum(conv, 0.0)

    # global average pooling for this image: mean over the H*W rows -> (1, Cout)
    pooled = jnp.mean(conv, axis=0, keepdims=True)

    # init the (B, Cout) feature accumulator at the start of each combo
    @pl.when(b == 0)
    def _():
        feat_sc[...] = jnp.zeros_like(feat_sc)

    # scatter the pooled row into the accumulator (branch-free select)
    row_ids = lax.broadcasted_iota(jnp.int32, (feat_sc.shape[0], 1), 0)
    feat_sc[...] = jnp.where(row_ids == b, pooled, feat_sc[...])

    # finalize: run the projection MLP once all B pooled features are ready
    @pl.when(b == nb - 1)
    def _():
        x = feat_sc[...]                                        # (B, Cout) f32
        h = jnp.dot(x.astype(jnp.bfloat16), w1_ref[...],
                    preferred_element_type=jnp.float32) + b1_ref[...]
        # BatchNorm1d, training mode (batch statistics, eps=1e-5), f32 math
        mu = jnp.mean(h, axis=0, keepdims=True)
        var = jnp.mean((h - mu) * (h - mu), axis=0, keepdims=True)
        hn = (h - mu) * lax.rsqrt(var + 1e-5)
        hn = hn * g_ref[...] + beta_ref[...]
        hr = jnp.maximum(hn, 0.0)
        proj_ref[...] = jnp.dot(hr.astype(jnp.bfloat16), w2_ref[...],
                                preferred_element_type=jnp.float32) + b2_ref[...]


def _pred_loss_kernel(s_ref, t_ref, w1_ref, b1_ref, w2_ref, b2_ref, out_ref):
    """Student predictor MLP (Linear -> ReLU -> Linear, no BN) fused with the
    BYOL loss: mean_b(loss(view1) + loss(view2))."""
    s = s_ref[...]                                              # (2B, Pd) f32
    h = jnp.dot(s.astype(jnp.bfloat16), w1_ref[...],
                preferred_element_type=jnp.float32) + b1_ref[...]
    h = jnp.maximum(h, 0.0)
    p = jnp.dot(h.astype(jnp.bfloat16), w2_ref[...],
                preferred_element_type=jnp.float32) + b2_ref[...]

    def inv_norm(x):
        # F.normalize(p=2, dim=-1, eps=1e-12): 1/max(||x||, 1e-12) via rsqrt (EUP)
        ss = jnp.sum(x * x, axis=-1, keepdims=True)
        return lax.rsqrt(jnp.maximum(ss, 1e-24))

    t = t_ref[...]
    pn = p * inv_norm(p)
    tn = t * inv_norm(t)
    per_row = 2.0 - 2.0 * jnp.sum(pn * tn, axis=-1, keepdims=True)   # (2B, 1)
    # rows are stacked [view1; view2] -> mean_b(l1 + l2) == 2 * mean over rows
    out_ref[...] = 2.0 * jnp.mean(per_row, axis=0, keepdims=True)


# ------------------------------ call helpers -------------------------------

def _full_spec(shape):
    # Tiny operands that live as a single full-array VMEM block.
    return pl.BlockSpec(shape, lambda i: (0,) * len(shape))


# ------------------------------ JAX-side glue -------------------------------

def _im2col_views(image_one, image_two, k=3):
    """Stack views, NCHW -> NHWC, pad, extract 3x3 stride-1 patches.

    Returns bf16 patches of shape (2, B, H*W, k*k*Cin) with im2col column
    order (ky, kx, cin) — the conv weight must use the same order.
    """
    x = jnp.stack([image_one, image_two], axis=0)                 # (2,B,C,H,W)
    x = jnp.transpose(x, (0, 1, 3, 4, 2)).astype(jnp.float32)     # (2,B,H,W,C)
    V, B, H, W, C = x.shape
    xp = jnp.pad(x, ((0, 0), (0, 0), (1, 1), (1, 1), (0, 0)))
    cols = []
    for ky in range(k):
        for kx in range(k):
            cols.append(xp[:, :, ky:ky + H, kx:kx + W, :])
    patches = jnp.concatenate(cols, axis=-1)                      # (2,B,H,W,k*k*C)
    return patches.reshape(V, B, H * W, k * k * C).astype(jnp.bfloat16)


def _stacked(student_p, teacher_p, name, dtype):
    # student/teacher weights stacked along a leading "model" axis.
    return jnp.stack([student_p[name], teacher_p[name]], axis=0).astype(dtype)


@functools.partial(jax.jit, static_argnames=())
def byol_forward(image_one, image_two, student_p, teacher_p, pred_p):
    patches = _im2col_views(image_one, image_two)        # (2, B, HW, K) bf16
    V, B, HW, K = patches.shape

    w_conv = _stacked(student_p, teacher_p, 'w_conv', jnp.bfloat16)   # (2,K,Cout)
    w1 = _stacked(student_p, teacher_p, 'proj_w1', jnp.bfloat16)
    b1 = _stacked(student_p, teacher_p, 'proj_b1', jnp.float32)
    gm = _stacked(student_p, teacher_p, 'proj_gamma', jnp.float32)
    bt = _stacked(student_p, teacher_p, 'proj_beta', jnp.float32)
    w2 = _stacked(student_p, teacher_p, 'proj_w2', jnp.bfloat16)
    b2 = _stacked(student_p, teacher_p, 'proj_b2', jnp.float32)

    cout = w_conv.shape[-1]
    hd = w1.shape[-1]
    pd = w2.shape[-1]

    # Fused backbone + projection for all (model, view, batch) combinations.
    proj = pl.pallas_call(
        _encoder_kernel,
        out_shape=jax.ShapeDtypeStruct((2, V, B, pd), jnp.float32),
        grid_spec=pltpu.PrefetchScalarGridSpec(
            num_scalar_prefetch=0,
            grid=(2, V, B),                    # (model, view, batch)
            in_specs=[
                pl.BlockSpec((None, None, HW, K), lambda m, v, b: (v, b, 0, 0)),
                pl.BlockSpec((None, K, cout),     lambda m, v, b: (m, 0, 0)),
                pl.BlockSpec((None, cout, hd),    lambda m, v, b: (m, 0, 0)),
                pl.BlockSpec((None, 1, hd),       lambda m, v, b: (m, 0, 0)),
                pl.BlockSpec((None, 1, hd),       lambda m, v, b: (m, 0, 0)),
                pl.BlockSpec((None, 1, hd),       lambda m, v, b: (m, 0, 0)),
                pl.BlockSpec((None, hd, pd),      lambda m, v, b: (m, 0, 0)),
                pl.BlockSpec((None, 1, pd),       lambda m, v, b: (m, 0, 0)),
            ],
            out_specs=pl.BlockSpec((None, None, B, pd),
                                   lambda m, v, b: (m, v, 0, 0)),
            scratch_shapes=[pltpu.VMEM((B, cout), jnp.float32)],
        ),
        compiler_params=pltpu.CompilerParams(
            dimension_semantics=("parallel", "parallel", "arbitrary"),
            vmem_limit_bytes=32 * 1024 * 1024),
    )(patches, w_conv, w1, b1, gm, bt, w2, b2)

    student_proj = proj[0].reshape(V * B, pd)                      # views stacked
    teacher_proj = lax.stop_gradient(proj[1]).reshape(V * B, pd)   # detach parity

    pw1 = pred_p['pred_w1'].astype(jnp.bfloat16)
    pw2 = pred_p['pred_w2'].astype(jnp.bfloat16)
    pb1 = pred_p['pred_b1']
    pb2 = pred_p['pred_b2']

    loss = pl.pallas_call(
        _pred_loss_kernel,
        out_shape=jax.ShapeDtypeStruct((1, 1), jnp.float32),
        grid=(1,),
        in_specs=[_full_spec(student_proj.shape),
                  _full_spec(teacher_proj.shape),
                  _full_spec(pw1.shape), _full_spec(pb1.shape),
                  _full_spec(pw2.shape), _full_spec(pb2.shape)],
        out_specs=_full_spec((1, 1)),
    )(student_proj, teacher_proj, pw1, pb1, pw2, pb2)
    return loss[0, 0]


# ----------------------------- parameter init -------------------------------

def init_params(key, cin=3, cout=64, k=3, in_features=64,
                proj_hidden=32, proj_size=16):
    ks = jax.random.split(key, 10)
    s = 0.05

    def rnd(i, shape):
        return jax.random.normal(ks[i], shape, jnp.float32) * s

    # NOTE: w_conv uses im2col column order (ky, kx, cin); a real PyTorch
    # conv weight (Cout, Cin, KH, KW) must be permuted to (KH, KW, Cin, Cout)
    # and reshaped to (KH*KW*Cin, Cout) before loading here.
    student = {
        'w_conv':     rnd(0, (k * k * cin, cout)),          # conv1, no bias
        'proj_w1':    rnd(1, (in_features, proj_hidden)),
        'proj_b1':    rnd(2, (1, proj_hidden)),
        'proj_gamma': jnp.ones((1, proj_hidden), jnp.float32),
        'proj_beta':  jnp.zeros((1, proj_hidden), jnp.float32),
        'proj_w2':    rnd(3, (proj_hidden, proj_size)),
        'proj_b2':    rnd(4, (1, proj_size)),
    }
    # teacher = deepcopy(student) at init -> identical values
    teacher = {k_: jnp.array(v) for k_, v in student.items()}
    predictor = {
        'pred_w1': rnd(5, (proj_size, proj_hidden)),
        'pred_b1': rnd(6, (1, proj_hidden)),
        'pred_w2': rnd(7, (proj_hidden, proj_size)),
        'pred_b2': rnd(8, (1, proj_size)),
    }
    return student, teacher, predictor


# ---------------------------------- main ------------------------------------

if __name__ == "__main__":
    key = jax.random.PRNGKey(0)
    k_img1, k_img2, k_par = jax.random.split(key, 3)

    # small shapes: batch=2, channels=3 (conv1 expects 3), spatial=16
    image_one = jax.random.normal(k_img1, (2, 3, 16, 16), jnp.float32)
    image_two = jax.random.normal(k_img2, (2, 3, 16, 16), jnp.float32)

    student_p, teacher_p, pred_p = init_params(k_par)

    loss = byol_forward(image_one, image_two, student_p, teacher_p, pred_p)
    jax.block_until_ready(loss)
    assert loss.shape == () and jnp.isfinite(loss)
    print("KERNEL_OK")
</pallas_src>

<mosaic_0001>
module attributes {stable_mosaic.version = 11 : i64} {
  func.func @_pred_loss_kernel(%arg0: i32, %arg1: memref<4x16xf32, #tpu.memory_space<vmem>>, %arg2: memref<4x16xf32, #tpu.memory_space<vmem>>, %arg3: memref<16x32xbf16, #tpu.memory_space<vmem>>, %arg4: memref<1x32xf32, #tpu.memory_space<vmem>>, %arg5: memref<32x16xbf16, #tpu.memory_space<vmem>>, %arg6: memref<1x16xf32, #tpu.memory_space<vmem>>, %arg7: memref<1x1xf32, #tpu.memory_space<vmem>>) attributes {dimension_semantics = [#tpu.dimension_semantics<arbitrary>], iteration_bounds = array<i64: 1>, scalar_prefetch = 0 : i64, scratch_operands = 0 : i64, tpu.core_type = #tpu.core_type<tc>, window_params = [{pipeline_mode = #tpu.pipeline_mode<synchronous>, transform_indices = @transform_0, window_bounds = array<i64: 4, 16>}, {pipeline_mode = #tpu.pipeline_mode<synchronous>, transform_indices = @transform_1, window_bounds = array<i64: 4, 16>}, {pipeline_mode = #tpu.pipeline_mode<synchronous>, transform_indices = @transform_2, window_bounds = array<i64: 16, 32>}, {pipeline_mode = #tpu.pipeline_mode<synchronous>, transform_indices = @transform_3, window_bounds = array<i64: 1, 32>}, {pipeline_mode = #tpu.pipeline_mode<synchronous>, transform_indices = @transform_4, window_bounds = array<i64: 32, 16>}, {pipeline_mode = #tpu.pipeline_mode<synchronous>, transform_indices = @transform_5, window_bounds = array<i64: 1, 16>}, {pipeline_mode = #tpu.pipeline_mode<synchronous>, transform_indices = @transform_6, window_bounds = array<i64: 1, 1>}]} {
    %c0 = arith.constant 0 : index
    %c0_0 = arith.constant 0 : index
    %0 = vector.load %arg1[%c0, %c0_0] : memref<4x16xf32, #tpu.memory_space<vmem>>, vector<4x16xf32>
    %1 = arith.truncf %0 : vector<4x16xf32> to vector<4x16xbf16>
    %c0_1 = arith.constant 0 : index
    %c0_2 = arith.constant 0 : index
    %2 = vector.load %arg3[%c0_1, %c0_2] : memref<16x32xbf16, #tpu.memory_space<vmem>>, vector<16x32xbf16>
    %cst = arith.constant dense<0.000000e+00> : vector<4x32xf32>
    %3 = tpu.matmul %1, %2, %cst {dimension_numbers = #tpu.dot_dimension_numbers<[1], [0], [0], [1], [0, 0, 1, 1], [], []>} : vector<4x16xbf16>, vector<16x32xbf16>, vector<4x32xf32> -> vector<4x32xf32>
    %c0_3 = arith.constant 0 : index
    %c0_4 = arith.constant 0 : index
    %4 = vector.load %arg4[%c0_3, %c0_4] : memref<1x32xf32, #tpu.memory_space<vmem>>, vector<1x32xf32>
    %5 = vector.broadcast %4 : vector<1x32xf32> to vector<4x32xf32>
    %6 = arith.addf %3, %5 : vector<4x32xf32>
    %cst_5 = arith.constant 0.000000e+00 : f32
    %7 = vector.broadcast %cst_5 : f32 to vector<4x32xf32>
    %8 = arith.maximumf %6, %7 : vector<4x32xf32>
    %9 = arith.truncf %8 : vector<4x32xf32> to vector<4x32xbf16>
    %c0_6 = arith.constant 0 : index
    %c0_7 = arith.constant 0 : index
    %10 = vector.load %arg5[%c0_6, %c0_7] : memref<32x16xbf16, #tpu.memory_space<vmem>>, vector<32x16xbf16>
    %cst_8 = arith.constant dense<0.000000e+00> : vector<4x16xf32>
    %11 = tpu.matmul %9, %10, %cst_8 {dimension_numbers = #tpu.dot_dimension_numbers<[1], [0], [0], [1], [0, 0, 1, 1], [], []>} : vector<4x32xbf16>, vector<32x16xbf16>, vector<4x16xf32> -> vector<4x16xf32>
    %c0_9 = arith.constant 0 : index
    %c0_10 = arith.constant 0 : index
    %12 = vector.load %arg6[%c0_9, %c0_10] : memref<1x16xf32, #tpu.memory_space<vmem>>, vector<1x16xf32>
    %13 = vector.broadcast %12 : vector<1x16xf32> to vector<4x16xf32>
    %14 = arith.addf %11, %13 : vector<4x16xf32>
    %c0_11 = arith.constant 0 : index
    %c0_12 = arith.constant 0 : index
    %15 = vector.load %arg2[%c0_11, %c0_12] : memref<4x16xf32, #tpu.memory_space<vmem>>, vector<4x16xf32>
    %16 = arith.mulf %14, %14 : vector<4x16xf32>
    %cst_13 = arith.constant dense<0.000000e+00> : vector<4xf32>
    %17 = vector.multi_reduction <add>, %16, %cst_13 [1] : vector<4x16xf32> to vector<4xf32>
    %18 = vector.shape_cast %17 : vector<4xf32> to vector<4x1xf32>
    %cst_14 = arith.constant 1.000000e-24 : f32
    %19 = vector.broadcast %cst_14 : f32 to vector<4x1xf32>
    %20 = arith.maximumf %18, %19 : vector<4x1xf32>
    %21 = math.rsqrt %20 : vector<4x1xf32>
    %22 = vector.broadcast %21 : vector<4x1xf32> to vector<4x16xf32>
    %23 = arith.mulf %14, %22 : vector<4x16xf32>
    %24 = arith.mulf %15, %15 : vector<4x16xf32>
    %cst_15 = arith.constant dense<0.000000e+00> : vector<4xf32>
    %25 = vector.multi_reduction <add>, %24, %cst_15 [1] : vector<4x16xf32> to vector<4xf32>
    %26 = vector.shape_cast %25 : vector<4xf32> to vector<4x1xf32>
    %cst_16 = arith.constant 1.000000e-24 : f32
    %27 = vector.broadcast %cst_16 : f32 to vector<4x1xf32>
    %28 = arith.maximumf %26, %27 : vector<4x1xf32>
    %29 = math.rsqrt %28 : vector<4x1xf32>
    %30 = vector.broadcast %29 : vector<4x1xf32> to vector<4x16xf32>
    %31 = arith.mulf %15, %30 : vector<4x16xf32>
    %32 = arith.mulf %23, %31 : vector<4x16xf32>
    %cst_17 = arith.constant dense<0.000000e+00> : vector<4xf32>
    %33 = vector.multi_reduction <add>, %32, %cst_17 [1] : vector<4x16xf32> to vector<4xf32>
    %34 = vector.shape_cast %33 : vector<4xf32> to vector<4x1xf32>
    %cst_18 = arith.constant 2.000000e+00 : f32
    %35 = vector.broadcast %cst_18 : f32 to vector<4x1xf32>
    %36 = arith.mulf %35, %34 : vector<4x1xf32>
    %cst_19 = arith.constant 2.000000e+00 : f32
    %37 = vector.broadcast %cst_19 : f32 to vector<4x1xf32>
    %38 = arith.subf %37, %36 : vector<4x1xf32>
    %cst_20 = arith.constant dense<0.000000e+00> : vector<1xf32>
    %39 = vector.multi_reduction <add>, %38, %cst_20 [0] : vector<4x1xf32> to vector<1xf32>
    %40 = vector.shape_cast %39 : vector<1xf32> to vector<1x1xf32>
    %cst_21 = arith.constant 4.000000e+00 : f32
    %41 = vector.broadcast %cst_21 : f32 to vector<1x1xf32>
    %42 = arith.divf %40, %41 : vector<1x1xf32>
    %cst_22 = arith.constant 2.000000e+00 : f32
    %43 = vector.broadcast %cst_22 : f32 to vector<1x1xf32>
    %44 = arith.mulf %43, %42 : vector<1x1xf32>
    %c0_23 = arith.constant 0 : index
    %c0_24 = arith.constant 0 : index
    %45 = vector.load %arg7[%c0_23, %c0_24] : memref<1x1xf32, #tpu.memory_space<vmem>>, vector<1x1xf32>
    tpu.vector_store %arg7[%c0_23, %c0_24], %44 {strides = array<i32>} : memref<1x1xf32, #tpu.memory_space<vmem>>, vector<1x1xf32>,
    return
  }
  func.func @transform_0(%arg0: i32) -> (i32, i32) {
    %c0_i32 = arith.constant 0 : i32
    %c0_i32_0 = arith.constant 0 : i32
    %c0_i32_1 = arith.constant 0 : i32
    return %c0_i32, %c0_i32_0 : i32, i32
  }
  func.func @transform_1(%arg0: i32) -> (i32, i32) {
    %c0_i32 = arith.constant 0 : i32
    %c0_i32_0 = arith.constant 0 : i32
    %c0_i32_1 = arith.constant 0 : i32
    return %c0_i32, %c0_i32_0 : i32, i32
  }
  func.func @transform_2(%arg0: i32) -> (i32, i32) {
    %c0_i32 = arith.constant 0 : i32
    %c0_i32_0 = arith.constant 0 : i32
    %c0_i32_1 = arith.constant 0 : i32
    return %c0_i32, %c0_i32_0 : i32, i32
  }
  func.func @transform_3(%arg0: i32) -> (i32, i32) {
    %c0_i32 = arith.constant 0 : i32
    %c0_i32_0 = arith.constant 0 : i32
    %c0_i32_1 = arith.constant 0 : i32
    return %c0_i32, %c0_i32_0 : i32, i32
  }
  func.func @transform_4(%arg0: i32) -> (i32, i32) {
    %c0_i32 = arith.constant 0 : i32
    %c0_i32_0 = arith.constant 0 : i32
    %c0_i32_1 = arith.constant 0 : i32
    return %c0_i32, %c0_i32_0 : i32, i32
  }
  func.func @transform_5(%arg0: i32) -> (i32, i32) {
    %c0_i32 = arith.constant 0 : i32
    %c0_i32_0 = arith.constant 0 : i32
    %c0_i32_1 = arith.constant 0 : i32
    return %c0_i32, %c0_i32_0 : i32, i32
  }
  func.func @transform_6(%arg0: i32) -> (i32, i32) {
    %c0_i32 = arith.constant 0 : i32
    %c0_i32_0 = arith.constant 0 : i32
    %c0_i32_1 = arith.constant 0 : i32
    return %c0_i32, %c0_i32_0 : i32, i32
  }
}

module attributes {stable_mosaic.version = 11 : i64} {
  func.func @_encoder_kernel(%arg0: i32, %arg1: i32, %arg2: i32, %arg3: memref<1x1x256x27xbf16, #tpu.memory_space<vmem>>, %arg4: memref<1x27x64xbf16, #tpu.memory_space<vmem>>, %arg5: memref<1x64x32xbf16, #tpu.memory_space<vmem>>, %arg6: memref<1x1x32xf32, #tpu.memory_space<vmem>>, %arg7: memref<1x1x32xf32, #tpu.memory_space<vmem>>, %arg8: memref<1x1x32xf32, #tpu.memory_space<vmem>>, %arg9: memref<1x32x16xbf16, #tpu.memory_space<vmem>>, %arg10: memref<1x1x16xf32, #tpu.memory_space<vmem>>, %arg11: memref<1x1x2x16xf32, #tpu.memory_space<vmem>>, %arg12: memref<2x64xf32, #tpu.memory_space<vmem>>) attributes {dimension_semantics = [#tpu.dimension_semantics<parallel>, #tpu.dimension_semantics<parallel>, #tpu.dimension_semantics<arbitrary>], iteration_bounds = array<i64: 2, 2, 2>, scalar_prefetch = 0 : i64, scratch_operands = 1 : i64, tpu.core_type = #tpu.core_type<tc>, window_params = [{transform_indices = @transform_0, window_bounds = array<i64: 1, 1, 256, 27>}, {transform_indices = @transform_1, window_bounds = array<i64: 1, 27, 64>}, {transform_indices = @transform_2, window_bounds = array<i64: 1, 64, 32>}, {transform_indices = @transform_3, window_bounds = array<i64: 1, 1, 32>}, {transform_indices = @transform_4, window_bounds = array<i64: 1, 1, 32>}, {transform_indices = @transform_5, window_bounds = array<i64: 1, 1, 32>}, {transform_indices = @transform_6, window_bounds = array<i64: 1, 32, 16>}, {transform_indices = @transform_7, window_bounds = array<i64: 1, 1, 16>}, {transform_indices = @transform_8, window_bounds = array<i64: 1, 1, 2, 16>}]} {
    %c0 = arith.constant 0 : index
    %c0_0 = arith.constant 0 : index
    %c0_1 = arith.constant 0 : index
    %c0_2 = arith.constant 0 : index
    %0 = vector.load %arg3[%c0, %c0_0, %c0_1, %c0_2] : memref<1x1x256x27xbf16, #tpu.memory_space<vmem>>, vector<1x1x256x27xbf16>
    %1 = vector.shape_cast %0 : vector<1x1x256x27xbf16> to vector<256x27xbf16>
    %c0_3 = arith.constant 0 : index
    %c0_4 = arith.constant 0 : index
    %c0_5 = arith.constant 0 : index
    %2 = vector.load %arg4[%c0_3, %c0_4, %c0_5] : memref<1x27x64xbf16, #tpu.memory_space<vmem>>, vector<1x27x64xbf16>
    %3 = vector.shape_cast %2 : vector<1x27x64xbf16> to vector<27x64xbf16>
    %cst = arith.constant dense<0.000000e+00> : vector<256x64xf32>
    %4 = tpu.matmul %1, %3, %cst {dimension_numbers = #tpu.dot_dimension_numbers<[1], [0], [0], [1], [0, 0, 1, 1], [], []>} : vector<256x27xbf16>, vector<27x64xbf16>, vector<256x64xf32> -> vector<256x64xf32>
    %cst_6 = arith.constant 0.000000e+00 : f32
    %5 = vector.broadcast %cst_6 : f32 to vector<256x64xf32>
    %6 = arith.maximumf %4, %5 : vector<256x64xf32>
    %cst_7 = arith.constant dense<0.000000e+00> : vector<64xf32>
    %7 = vector.multi_reduction <add>, %6, %cst_7 [0] : vector<256x64xf32> to vector<64xf32>
    %8 = vector.shape_cast %7 : vector<64xf32> to vector<1x64xf32>
    %cst_8 = arith.constant 2.560000e+02 : f32
    %9 = vector.broadcast %cst_8 : f32 to vector<1x64xf32>
    %10 = arith.divf %8, %9 : vector<1x64xf32>
    %c0_i32 = arith.constant 0 : i32
    %11 = arith.cmpi eq, %arg2, %c0_i32 : i32
    %12 = arith.extui %11 : i1 to i32
    %c0_i32_9 = arith.constant 0 : i32
    %13 = arith.cmpi ne, %12, %c0_i32_9 : i32
    scf.if %13 {
      %cst_15 = arith.constant 0.000000e+00 : f32
      %27 = vector.broadcast %cst_15 : f32 to vector<2x64xf32>
      %c0_16 = arith.constant 0 : index
      %c0_17 = arith.constant 0 : index
      %28 = vector.load %arg12[%c0_16, %c0_17] : memref<2x64xf32, #tpu.memory_space<vmem>>, vector<2x64xf32>
      tpu.vector_store %arg12[%c0_16, %c0_17], %27 {strides = array<i32>} : memref<2x64xf32, #tpu.memory_space<vmem>>, vector<2x64xf32>,
    } else {
    }
    %14 = tpu.iota {dimensions = array<i32: 0>} : vector<2x1xi32>
    %15 = vector.broadcast %arg2 : i32 to vector<2x1xi32>
    %16 = arith.cmpi eq, %14, %15 : vector<2x1xi32>
    %c0_10 = arith.constant 0 : index
    %c0_11 = arith.constant 0 : index
    %17 = vector.load %arg12[%c0_10, %c0_11] : memref<2x64xf32, #tpu.memory_space<vmem>>, vector<2x64xf32>
    %18 = vector.shape_cast %16 : vector<2x1xi1> to vector<2x1xi1>
    %19 = vector.broadcast %18 : vector<2x1xi1> to vector<2x64xi1>
    %20 = vector.shape_cast %10 : vector<1x64xf32> to vector<1x64xf32>
    %21 = vector.broadcast %20 : vector<1x64xf32> to vector<2x64xf32>
    %22 = arith.select %19, %21, %17 : vector<2x64xi1>, vector<2x64xf32>
    %c0_12 = arith.constant 0 : index
    %c0_13 = arith.constant 0 : index
    %23 = vector.load %arg12[%c0_12, %c0_13] : memref<2x64xf32, #tpu.memory_space<vmem>>, vector<2x64xf32>
    tpu.vector_store %arg12[%c0_12, %c0_13], %22 {strides = array<i32>} : memref<2x64xf32, #tpu.memory_space<vmem>>, vector<2x64xf32>,
    %c1_i32 = arith.constant 1 : i32
    %24 = arith.cmpi eq, %arg2, %c1_i32 : i32
    %25 = arith.extui %24 : i1 to i32
    %c0_i32_14 = arith.constant 0 : i32
    %26 = arith.cmpi ne, %25, %c0_i32_14 : i32
    scf.if %26 {
      %c0_15 = arith.constant 0 : index
      %c0_16 = arith.constant 0 : index
      %27 = vector.load %arg12[%c0_15, %c0_16] : memref<2x64xf32, #tpu.memory_space<vmem>>, vector<2x64xf32>
      %28 = arith.truncf %27 : vector<2x64xf32> to vector<2x64xbf16>
      %c0_17 = arith.constant 0 : index
      %c0_18 = arith.constant 0 : index
      %c0_19 = arith.constant 0 : index
      %29 = vector.load %arg5[%c0_17, %c0_18, %c0_19] : memref<1x64x32xbf16, #tpu.memory_space<vmem>>, vector<1x64x32xbf16>
      %30 = vector.shape_cast %29 : vector<1x64x32xbf16> to vector<64x32xbf16>
      %cst_20 = arith.constant dense<0.000000e+00> : vector<2x32xf32>
      %31 = tpu.matmul %28, %30, %cst_20 {dimension_numbers = #tpu.dot_dimension_numbers<[1], [0], [0], [1], [0, 0, 1, 1], [], []>} : vector<2x64xbf16>, vector<64x32xbf16>, vector<2x32xf32> -> vector<2x32xf32>
      %c0_21 = arith.constant 0 : index
      %c0_22 = arith.constant 0 : index
      %c0_23 = arith.constant 0 : index
      %32 = vector.load %arg6[%c0_21, %c0_22, %c0_23] : memref<1x1x32xf32, #tpu.memory_space<vmem>>, vector<1x1x32xf32>
      %33 = vector.shape_cast %32 : vector<1x1x32xf32> to vector<1x32xf32>
      %34 = vector.broadcast %33 : vector<1x32xf32> to vector<2x32xf32>
      %35 = arith.addf %31, %34 : vector<2x32xf32>
      %cst_24 = arith.constant dense<0.000000e+00> : vector<32xf32>
      %36 = vector.multi_reduction <add>, %35, %cst_24 [0] : vector<2x32xf32> to vector<32xf32>
      %37 = vector.shape_cast %36 : vector<32xf32> to vector<1x32xf32>
      %cst_25 = arith.constant 2.000000e+00 : f32
      %38 = vector.broadcast %cst_25 : f32 to vector<1x32xf32>
      %39 = arith.divf %37, %38 : vector<1x32xf32>
      %40 = vector.broadcast %39 : vector<1x32xf32> to vector<2x32xf32>
      %41 = arith.subf %35, %40 : vector<2x32xf32>
      %42 = vector.broadcast %39 : vector<1x32xf32> to vector<2x32xf32>
      %43 = arith.subf %35, %42 : vector<2x32xf32>
      %44 = arith.mulf %41, %43 : vector<2x32xf32>
      %cst_26 = arith.constant dense<0.000000e+00> : vector<32xf32>
      %45 = vector.multi_reduction <add>, %44, %cst_26 [0] : vector<2x32xf32> to vector<32xf32>
      %46 = vector.shape_cast %45 : vector<32xf32> to vector<1x32xf32>
      %cst_27 = arith.constant 2.000000e+00 : f32
      %47 = vector.broadcast %cst_27 : f32 to vector<1x32xf32>
      %48 = arith.divf %46, %47 : vector<1x32xf32>
      %49 = vector.broadcast %39 : vector<1x32xf32> to vector<2x32xf32>
      %50 = arith.subf %35, %49 : vector<2x32xf32>
      %cst_28 = arith.constant 9.99999974E-6 : f32
      %51 = vector.broadcast %cst_28 : f32 to vector<1x32xf32>
      %52 = arith.addf %48, %51 : vector<1x32xf32>
      %53 = math.rsqrt %52 : vector<1x32xf32>
      %54 = vector.broadcast %53 : vector<1x32xf32> to vector<2x32xf32>
      %55 = arith.mulf %50, %54 : vector<2x32xf32>
      %c0_29 = arith.constant 0 : index
      %c0_30 = arith.constant 0 : index
      %c0_31 = arith.constant 0 : index
      %56 = vector.load %arg7[%c0_29, %c0_30, %c0_31] : memref<1x1x32xf32, #tpu.memory_space<vmem>>, vector<1x1x32xf32>
      %57 = vector.shape_cast %56 : vector<1x1x32xf32> to vector<1x32xf32>
      %58 = vector.broadcast %57 : vector<1x32xf32> to vector<2x32xf32>
      %59 = arith.mulf %55, %58 : vector<2x32xf32>
      %c0_32 = arith.constant 0 : index
      %c0_33 = arith.constant 0 : index
      %c0_34 = arith.constant 0 : index
      %60 = vector.load %arg8[%c0_32, %c0_33, %c0_34] : memref<1x1x32xf32, #tpu.memory_space<vmem>>, vector<1x1x32xf32>
      %61 = vector.shape_cast %60 : vector<1x1x32xf32> to vector<1x32xf32>
      %62 = vector.broadcast %61 : vector<1x32xf32> to vector<2x32xf32>
      %63 = arith.addf %59, %62 : vector<2x32xf32>
      %cst_35 = arith.constant 0.000000e+00 : f32
      %64 = vector.broadcast %cst_35 : f32 to vector<2x32xf32>
      %65 = arith.maximumf %63, %64 : vector<2x32xf32>
      %66 = arith.truncf %65 : vector<2x32xf32> to vector<2x32xbf16>
      %c0_36 = arith.constant 0 : index
      %c0_37 = arith.constant 0 : index
      %c0_38 = arith.constant 0 : index
      %67 = vector.load %arg9[%c0_36, %c0_37, %c0_38] : memref<1x32x16xbf16, #tpu.memory_space<vmem>>, vector<1x32x16xbf16>
      %68 = vector.shape_cast %67 : vector<1x32x16xbf16> to vector<32x16xbf16>
      %cst_39 = arith.constant dense<0.000000e+00> : vector<2x16xf32>
      %69 = tpu.matmul %66, %68, %cst_39 {dimension_numbers = #tpu.dot_dimension_numbers<[1], [0], [0], [1], [0, 0, 1, 1], [], []>} : vector<2x32xbf16>, vector<32x16xbf16>, vector<2x16xf32> -> vector<2x16xf32>
      %c0_40 = arith.constant 0 : index
      %c0_41 = arith.constant 0 : index
      %c0_42 = arith.constant 0 : index
      %70 = vector.load %arg10[%c0_40, %c0_41, %c0_42] : memref<1x1x16xf32, #tpu.memory_space<vmem>>, vector<1x1x16xf32>
      %71 = vector.shape_cast %70 : vector<1x1x16xf32> to vector<1x16xf32>
      %72 = vector.broadcast %71 : vector<1x16xf32> to vector<2x16xf32>
      %73 = arith.addf %69, %72 : vector<2x16xf32>
      %c0_43 = arith.constant 0 : index
      %c0_44 = arith.constant 0 : index
      %c0_45 = arith.constant 0 : index
      %c0_46 = arith.constant 0 : index
      %74 = vector.load %arg11[%c0_43, %c0_44, %c0_45, %c0_46] : memref<1x1x2x16xf32, #tpu.memory_space<vmem>>, vector<1x1x2x16xf32>
      %75 = vector.shape_cast %74 : vector<1x1x2x16xf32> to vector<2x16xf32>
      %76 = vector.shape_cast %73 : vector<2x16xf32> to vector<1x1x2x16xf32>
      tpu.vector_store %arg11[%c0_43, %c0_44, %c0_45, %c0_46], %76 {strides = array<i32>} : memref<1x1x2x16xf32, #tpu.memory_space<vmem>>, vector<1x1x2x16xf32>,
    } else {
    }
    return
  }
  func.func @transform_0(%arg0: i32, %arg1: i32, %arg2: i32) -> (i32, i32, i32, i32) {
    %c0_i32 = arith.constant 0 : i32
    %c0_i32_0 = arith.constant 0 : i32
    %c0_i32_1 = arith.constant 0 : i32
    return %arg1, %arg2, %c0_i32, %c0_i32_0 : i32, i32, i32, i32
  }
  func.func @transform_1(%arg0: i32, %arg1: i32, %arg2: i32) -> (i32, i32, i32) {
    %c0_i32 = arith.constant 0 : i32
    %c0_i32_0 = arith.constant 0 : i32
    %c0_i32_1 = arith.constant 0 : i32
    return %arg0, %c0_i32, %c0_i32_0 : i32, i32, i32
  }
  func.func @transform_2(%arg0: i32, %arg1: i32, %arg2: i32) -> (i32, i32, i32) {
    %c0_i32 = arith.constant 0 : i32
    %c0_i32_0 = arith.constant 0 : i32
    %c0_i32_1 = arith.constant 0 : i32
    return %arg0, %c0_i32, %c0_i32_0 : i32, i32, i32
  }
  func.func @transform_3(%arg0: i32, %arg1: i32, %arg2: i32) -> (i32, i32, i32) {
    %c0_i32 = arith.constant 0 : i32
    %c0_i32_0 = arith.constant 0 : i32
    %c0_i32_1 = arith.constant 0 : i32
    return %arg0, %c0_i32, %c0_i32_0 : i32, i32, i32
  }
  func.func @transform_4(%arg0: i32, %arg1: i32, %arg2: i32) -> (i32, i32, i32) {
    %c0_i32 = arith.constant 0 : i32
    %c0_i32_0 = arith.constant 0 : i32
    %c0_i32_1 = arith.constant 0 : i32
    return %arg0, %c0_i32, %c0_i32_0 : i32, i32, i32
  }
  func.func @transform_5(%arg0: i32, %arg1: i32, %arg2: i32) -> (i32, i32, i32) {
    %c0_i32 = arith.constant 0 : i32
    %c0_i32_0 = arith.constant 0 : i32
    %c0_i32_1 = arith.constant 0 : i32
    return %arg0, %c0_i32, %c0_i32_0 : i32, i32, i32
  }
  func.func @transform_6(%arg0: i32, %arg1: i32, %arg2: i32) -> (i32, i32, i32) {
    %c0_i32 = arith.constant 0 : i32
    %c0_i32_0 = arith.constant 0 : i32
    %c0_i32_1 = arith.constant 0 : i32
    return %arg0, %c0_i32, %c0_i32_0 : i32, i32, i32
  }
  func.func @transform_7(%arg0: i32, %arg1: i32, %arg2: i32) -> (i32, i32, i32) {
    %c0_i32 = arith.constant 0 : i32
    %c0_i32_0 = arith.constant 0 : i32
    %c0_i32_1 = arith.constant 0 : i32
    return %arg0, %c0_i32, %c0_i32_0 : i32, i32, i32
  }
  func.func @transform_8(%arg0: i32, %arg1: i32, %arg2: i32) -> (i32, i32, i32, i32) {
    %c0_i32 = arith.constant 0 : i32
    %c0_i32_0 = arith.constant 0 : i32
    %c0_i32_1 = arith.constant 0 : i32
    return %arg0, %arg1, %c0_i32, %c0_i32_0 : i32, i32, i32, i32
  }
}

</mosaic_0001>

<llo_original>
// kernel: byol_forward.3
$region0: #{byol_forward.3}
  #allocation0 [shape = 'u32[]', space=smem, size = 0x4, offset = 0x4, fixed_abs, tag = 'smem constant byte address 0x4 - core index']
  #allocation1 [shape = 'u32[72,128]{1,0:T(1,128)}', space=vmem, size = 0x9000, scoped, tag = 'internal scratch']
  %s0 = inlined_call_operand.vmem [shape: f32[4,16], index: 0, kind: input, shape index: {}]
  %s1 = inlined_call_operand.vmem [shape: f32[4,16], index: 1, kind: input, shape index: {}]
  %s2 = inlined_call_operand.vmem [shape: bf16[16,32], index: 2, kind: input, shape index: {}]
  %s3 = inlined_call_operand.vmem [shape: f32[1,32], index: 3, kind: input, shape index: {}]
  %s4 = inlined_call_operand.vmem [shape: bf16[32,16], index: 4, kind: input, shape index: {}]
  %s5 = inlined_call_operand.vmem [shape: f32[1,16], index: 5, kind: input, shape index: {}]
  %s6 = inlined_call_operand.hbm [shape: f32[1,1], index: 6, kind: output, shape index: {}]
  %s7 = sld [smem:[#allocation0]]
  $region34: #{byol_forward.3} parent=0
    _
  %s9 = ssub.s32 1, %s7
  %s10 = scalar_select 0, %s9, %s7
  $region1: #{byol_forward.3} parent=0
    #allocation2 [shape = 'u8[512]{0}', space=vmem, size = 0x400, scoped, tag = 'output window, operand 0, single buffered']
    #allocation3 [shape = 's32[1]{0}', space=sflag, size = 0x4, scoped, tag = 'scoped memory for byol_forward.3']
    %11 = vsyncpa [#allocation3], 0
    // Predicated region
    $region2: #{byol_forward.3} parent=1 // pred_check
      _
    $region3: #{byol_forward.3} parent=1 // pred_check_branch
      %13 = sbr.rel (0) target = $region5
    $region4: #{byol_forward.3} parent=1 // pred_region
      _
    $region5: #{byol_forward.3} parent=1 // pred_fallthru
      _
    // Predicated region
    $region6: #{byol_forward.3} parent=1 // pred_check
      _
    $region7: #{byol_forward.3} parent=1 // pred_check_branch
      %15 = sbr.rel (0) target = $region9
    $region8: #{byol_forward.3} parent=1 // pred_region
      _
    $region9: #{byol_forward.3} parent=1 // pred_fallthru
      _
    // Predicated region
    $region10: #{byol_forward.3} parent=1 // pred_check
      _
    $region11: #{byol_forward.3} parent=1 // pred_check_branch
      %17 = sbr.rel (0) target = $region13
    $region12: #{byol_forward.3} parent=1 // pred_region
      _
    $region13: #{byol_forward.3} parent=1 // pred_fallthru
      _
    // Predicated region
    $region14: #{byol_forward.3} parent=1 // pred_check
      _
    $region15: #{byol_forward.3} parent=1 // pred_check_branch
      %19 = sbr.rel (0) target = $region17
    $region16: #{byol_forward.3} parent=1 // pred_region
      _
    $region17: #{byol_forward.3} parent=1 // pred_fallthru
      _
    // Predicated region
    $region18: #{byol_forward.3} parent=1 // pred_check
      _
    $region19: #{byol_forward.3} parent=1 // pred_check_branch
      %21 = sbr.rel (0) target = $region21
    $region20: #{byol_forward.3} parent=1 // pred_region
      _
    $region21: #{byol_forward.3} parent=1 // pred_fallthru
      _
    // Predicated region
    $region22: #{byol_forward.3} parent=1 // pred_check
      _
    $region23: #{byol_forward.3} parent=1 // pred_check_branch
      %23 = sbr.rel (0) target = $region25
    $region24: #{byol_forward.3} parent=1 // pred_region
      _
    $region25: #{byol_forward.3} parent=1 // pred_fallthru
      _
    %v25 = vld [vmem:[%s0] sm:$0xf]
    %v26 = vpack.c.bf16 %v25, %v25
    %v27 = vld [vmem:[%s2] sm:$0xf]
    %v28 = vld [vmem:[%s2 + $0x4] sm:$0xf]
    %v29 = vld [vmem:[%s3] sm:$0x1]
    %v31 = vperm.slane %v29, 0
    %v35 = vunpack.c.l.b16 %v27
    %v36 = vunpack.c.l.b16 %v28
    %v37 = vpack.c.b16 %v36, %v35
    %vm39 = vcmask 130048
    %v41 = vsel %vm39, %v26, 0
    %43 = vmatpush.bf16.msra.mxu0 0
    %44 = vmatpush.bf16.msra.mxu0 0
    %45 = vmatpush.bf16.msra.mxu0 0
    %46 = vmatpush.bf16.msra.mxu0 0
    %47 = vmatpush.bf16.msra.mxu0 0
    %48 = vmatpush.bf16.msra.mxu0 0
    %49 = vmatpush.bf16.msra.mxu0 0
    %50 = vmatpush.bf16.msra.mxu0 %v37
    %51 = vmatmul.bf16.gmra.mxu0 %v41
    %v52 = vpop.f32.mrf.mxu0
    %v53 = vadd.f32 %v31, %v52
    %v54 = vpop.f32.mrf.mxu0
    %55 = vdwg.mxu0
    %v56 = vmax.f32 %v53, 0.0
    %v57 = vpack.c.bf16 %v56, %v56
    %v58 = vld [vmem:[%s4] sm:$0xf]
    %v59 = vld [vmem:[%s4 + $0x4] sm:$0xf]
    %v60 = vld [vmem:[%s4 + $0x8] sm:$0xf]
    %v61 = vld [vmem:[%s4 + $0xc] sm:$0xf]
    %v62 = vld [vmem:[%s5] sm:$0x1]
    %v64 = vperm.slane %v62, 0
    %v70 = vunpack.c.l.b16 %v58
    %v71 = vunpack.c.l.b16 %v59
    %v72 = vunpack.c.l.b16 %v60
    %v73 = vunpack.c.l.b16 %v61
    %v74 = vpack.c.b16 %v71, %v70
    %v75 = vpack.c.b16 %v73, %v72
    %vm78 = vcmask 261120
    %v80 = vsel %vm78, %v57, 0
    %82 = vmatpush.bf16.msra.mxu0 0
    %83 = vmatpush.bf16.msra.mxu0 0
    %84 = vmatpush.bf16.msra.mxu0 0
    %85 = vmatpush.bf16.msra.mxu0 0
    %86 = vmatpush.bf16.msra.mxu0 0
    %87 = vmatpush.bf16.msra.mxu0 0
    %88 = vmatpush.bf16.msra.mxu0 %v75
    %89 = vmatpush.bf16.msra.mxu0 %v74
    %90 = vmatmul.bf16.gmra.mxu0 %v80
    %v91 = vpop.f32.mrf.mxu0
    %v92 = vadd.f32 %v64, %v91
    %v93 = vpop.f32.mrf.mxu0
    %94 = vdwg.mxu0
    %v95 = vld [vmem:[%s1] sm:$0xf]
    %v96 = vmul.f32 %v92, %v92
    %vm97 = vcmask 125952
    %v98 = vsel %vm97, %v96, 0.0
    %99 = vadd.xlane.f32.xlu0 %v98
    %v100 = vpop.xlane.xlu0 %99
    %v101 = vmax.f32 %v100, 1e-24
    %v102 = vrsqrt.pop %v101
    %v103 = vmul.f32 %v102, %v101
    %v104 = vmul.f32 %v103, %v102
    %v105 = vmul.f32 0.5, %v104
    %v106 = vsub.f32 1.5, %v105
    %v107 = vmul.f32 %v102, %v106
    %vm108 = vweird.f32 %v101
    %vm109 = vweird.f32 %v102
    %vm110 = vmor %vm108, %vm109
    %v111 = vsel %vm110, %v102, %v107
    %v112 = vmul.f32 %v92, %v111
    %v113 = vmul.f32 %v95, %v95
    %v114 = vsel %vm97, %v113, 0.0
    %115 = vadd.xlane.f32.xlu0 %v114
    %v116 = vpop.xlane.xlu0 %115
    %v117 = vmax.f32 %v116, 1e-24
    %v118 = vrsqrt.pop %v117
    %v119 = vmul.f32 %v118, %v117
    %v120 = vmul.f32 %v119, %v118
    %v121 = vmul.f32 0.5, %v120
    %v122 = vsub.f32 1.5, %v121
    %v123 = vmul.f32 %v118, %v122
    %vm124 = vweird.f32 %v117
    %vm125 = vweird.f32 %v118
    %vm126 = vmor %vm124, %vm125
    %v127 = vsel %vm126, %v118, %v123
    %v128 = vmul.f32 %v95, %v127
    %v129 = vmul.f32 %v112, %v128
    %v130 = vsel %vm97, %v129, 0.0
    %131 = vadd.xlane.f32.xlu0 %v130
    %v132 = vpop.xlane.xlu0 %131
    %v133 = vmul.f32 %v132, 2.0
    %v134 = vsub.f32 2.0, %v133
    %vm135 = vcmask 1043456
    %v136 = vsel %vm135, %v134, 0.0
    %v137 = vrot.slane %v136, 4
    %v138 = vadd.f32 %v136, %v137
    %v139 = vrot.slane %v138, 2
    %v140 = vadd.f32 %v138, %v139
    %v141 = vrot.slane %v140, 1
    %v142 = vadd.f32 %v140, %v141
    %v143 = vrcp.pop 4.0
    %v144 = vmul.f32 4.0, %v143
    %v145 = vsub.f32 1.0, %v144
    %v146 = vmul.f32 %v143, %v145
    %v147 = vadd.f32 %v143, %v146
    %vm148 = vweird.f32 %v143
    %v149 = vsel %vm148, %v143, %v147
    %v150 = vmul.f32 %v142, %v149
    %v151 = vmul.f32 %v150, 2.0
    %vm152 = vcmask 0
    %153 = vst.msk [vmem:[#allocation2] sm:$0x1] %vm152, %v151
    // Predicated region
    $region26: #{byol_forward.3} parent=1 // pred_check
      _
    $region27: #{byol_forward.3} parent=1 // pred_check_branch
      %155 = sbr.rel (0) target = $region29
    $region28: #{byol_forward.3} parent=1 // pred_region
      %157 = vsyncadd [#allocation3], 0
      %s159 = sshll.u32 [#allocation2], 4
      %s160 = int_to_ptr.vmem [resolvable:$true] %s159
      %s161 = sshll.u32 %s6, 4
      %s162 = int_to_ptr.hbm [resolvable:$true] %s161
      %164 = dma.vmem_to_hbm [thread:$0]  %s160, 16, %s162, [#allocation3]
    $region29: #{byol_forward.3} parent=1 // pred_fallthru
      _
    // Predicated region
    $region30: #{byol_forward.3} parent=1 // pred_check
      _
    $region31: #{byol_forward.3} parent=1 // pred_check_branch
      %166 = sbr.rel (0) target = $region33
    $region32: #{byol_forward.3} parent=1 // pred_region
      %168 = dma.done [#allocation3], 16
    $region33: #{byol_forward.3} parent=1 // pred_fallthru
      _
    %169 = vsyncpa [#allocation3], 1

// kernel: byol_forward.2
$region0: #{byol_forward.2}
  #allocation0 [shape = 'u32[]', space=smem, size = 0x4, offset = 0x4, fixed_abs, tag = 'smem constant byte address 0x4 - core index']
  #allocation1 [shape = 'u32[72,128]{1,0:T(1,128)}', space=vmem, size = 0x9000, scoped, tag = 'internal scratch']
  #allocation2 [shape = 'f32[2,64]{1,0:T(2,128)}', space=vmem, size = 0x400, scoped, tag = 'scratch operand']
  %s0 = inlined_call_operand.vmem [shape: bf16[2,2,256,27], index: 0, kind: input, shape index: {}]
  %s1 = inlined_call_operand.vmem [shape: bf16[2,27,64], index: 1, kind: input, shape index: {}]
  %s2 = inlined_call_operand.vmem [shape: bf16[2,64,32], index: 2, kind: input, shape index: {}]
  %s3 = inlined_call_operand.vmem [shape: f32[2,1,32], index: 3, kind: input, shape index: {}]
  %s4 = inlined_call_operand.vmem [shape: f32[2,1,32], index: 4, kind: input, shape index: {}]
  %s5 = inlined_call_operand.vmem [shape: f32[2,1,32], index: 5, kind: input, shape index: {}]
  %s6 = inlined_call_operand.vmem [shape: bf16[2,32,16], index: 6, kind: input, shape index: {}]
  %s7 = inlined_call_operand.vmem [shape: f32[2,1,16], index: 7, kind: input, shape index: {}]
  %s8 = inlined_call_operand.vmem [shape: f32[2,2,2,16], index: 8, kind: output, shape index: {}]
  %s9 = sld [smem:[#allocation0]]
  $region73: #{byol_forward.2} parent=0
    _
  %s11 = ssub.s32 1, %s9
  %s12 = scalar_select 0, %s11, %s9
  loop: start=0, step=1, limit=10
  $region2: #{byol_forward.2} parent=0 // loop_pre_header
    _
  $region3: #{byol_forward.2} parent=0 // loop_header
    %s14 = sphi 0, %s18
    %p15 = scmp.ge.s32.totalorder %s14, 10
    %s21 = sphi 0, %s40
    %s22 = sphi 0, %s36
    %s23 = sphi 0, %s32
    %s24 = sphi 0, %s21
    %s25 = sphi 0, %s22
    %s26 = sphi 0, %s23
    %s27 = sphi 0, %s24
    %s28 = sphi 0, %s25
    %s29 = sphi 0, %s26
    %s45 = sphi 0, %s47
    %s48 = sphi 0, %s45
    %s49 = sphi 0, %s48
    %s65 = sphi 0, %s49
    %s71 = sphi 0, %s73
    %s74 = sphi 0, %s71
    %s75 = sphi 0, %s74
    %s91 = sphi 0, %s75
    %s97 = sphi 0, %s99
    %s100 = sphi 0, %s97
    %s101 = sphi 0, %s100
    %s117 = sphi 0, %s101
    %s123 = sphi 0, %s125
    %s126 = sphi 0, %s123
    %s127 = sphi 0, %s126
    %s143 = sphi 0, %s127
    %s149 = sphi 0, %s151
    %s152 = sphi 0, %s149
    %s153 = sphi 0, %s152
    %s169 = sphi 0, %s153
    %s175 = sphi 0, %s177
    %s178 = sphi 0, %s175
    %s179 = sphi 0, %s178
    %s195 = sphi 0, %s179
    %s201 = sphi 0, %s203
    %s204 = sphi 0, %s201
    %s205 = sphi 0, %s204
    %s221 = sphi 0, %s205
    %s227 = sphi 0, %s229
    %s230 = sphi 0, %s227
    %s231 = sphi 0, %s230
    %s247 = sphi 0, %s231
    %s255 = sphi 0, %s257
    %s258 = sphi 0, %s255
    %s259 = sphi 0, %s258
    %s275 = sphi 0, %s259
  $region4: #{byol_forward.2} parent=0 // loop_header_branch
    %17 = sbr.rel (%p15) target = $region8
  $region5: #{byol_forward.2} parent=0 // loop_body
    %s19 = ssub.s32 %s14, 1
    %s20 = ssub.s32 %s14, 2
    %s30 = sadd.s32 1, %s23
    %p31 = scmp.ge.s32.totalorder %s30, 2
    %s32 = scalar_select %p31, 0, %s30
    %s33 = sadd.s32 1, %s22
    %s34 = scalar_select %p31, %s33, %s22
    %p35 = scmp.ge.s32.totalorder %s34, 2
    %s36 = scalar_select %p35, 0, %s34
    %s37 = sadd.s32 1, %s21
    %s38 = scalar_select %p35, %s37, %s21
    %p39 = scmp.ge.s32.totalorder %s38, 2
    %s40 = scalar_select %p39, 0, %s38
    %s41 = ssub.s32 %s22, %s36
    %s42 = ssub.s32 %s23, %s32
    %s43 = sor.u32 %s41, %s42
    %p44 = scmp.eq.s32.totalorder %s43, 0
    %s46 = sadd.s32 %s45, 1
    %s47 = scalar_select %p44, %s45, %s46
    %p50 = pneg %p44
    %p51 = scmp.eq.s32.totalorder %s14, 7
    %p52 = por %p50, %p51
    %p53 = scmp.ne.s32.totalorder %s45, %s48
    %p54 = scmp.eq.s32.totalorder %s14, 0
    %p55 = por %p53, %p54
    %p56 = scmp.ne.s32.totalorder %s45, %s48
    %p57 = scmp.eq.s32.totalorder %s19, 7
    %p58 = por %p56, %p57
    %p59 = scmp.ne.s32.totalorder %s48, %s49
    %p60 = scmp.eq.s32.totalorder %s19, 0
    %p61 = por %p59, %p60
    %p62 = scmp.ne.s32.totalorder %s48, %s49
    %p63 = scmp.eq.s32.totalorder %s20, 7
    %p64 = por %p62, %p63
    %p66 = scmp.ne.s32.totalorder %s49, %s65
    %p67 = scmp.eq.s32.totalorder %s20, 0
    %p68 = por %p66, %p67
    %s69 = ssub.s32 %s21, %s40
    %p70 = scmp.eq.s32.totalorder %s69, 0
    %s72 = sadd.s32 %s71, 1
    %s73 = scalar_select %p70, %s71, %s72
    %p76 = pneg %p70
    %p77 = scmp.eq.s32.totalorder %s14, 7
    %p78 = por %p76, %p77
    %p79 = scmp.ne.s32.totalorder %s71, %s74
    %p80 = scmp.eq.s32.totalorder %s14, 0
    %p81 = por %p79, %p80
    %p82 = scmp.ne.s32.totalorder %s71, %s74
    %p83 = scmp.eq.s32.totalorder %s19, 7
    %p84 = por %p82, %p83
    %p85 = scmp.ne.s32.totalorder %s74, %s75
    %p86 = scmp.eq.s32.totalorder %s19, 0
    %p87 = por %p85, %p86
    %p88 = scmp.ne.s32.totalorder %s74, %s75
    %p89 = scmp.eq.s32.totalorder %s20, 7
    %p90 = por %p88, %p89
    %p92 = scmp.ne.s32.totalorder %s75, %s91
    %p93 = scmp.eq.s32.totalorder %s20, 0
    %p94 = por %p92, %p93
    %s95 = ssub.s32 %s21, %s40
    %p96 = scmp.eq.s32.totalorder %s95, 0
    %s98 = sadd.s32 %s97, 1
    %s99 = scalar_select %p96, %s97, %s98
    %p102 = pneg %p96
    %p103 = scmp.eq.s32.totalorder %s14, 7
    %p104 = por %p102, %p103
    %p105 = scmp.ne.s32.totalorder %s97, %s100
    %p106 = scmp.eq.s32.totalorder %s14, 0
    %p107 = por %p105, %p106
    %p108 = scmp.ne.s32.totalorder %s97, %s100
    %p109 = scmp.eq.s32.totalorder %s19, 7
    %p110 = por %p108, %p109
    %p111 = scmp.ne.s32.totalorder %s100, %s101
    %p112 = scmp.eq.s32.totalorder %s19, 0
    %p113 = por %p111, %p112
    %p114 = scmp.ne.s32.totalorder %s100, %s101
    %p115 = scmp.eq.s32.totalorder %s20, 7
    %p116 = por %p114, %p115
    %p118 = scmp.ne.s32.totalorder %s101, %s117
    %p119 = scmp.eq.s32.totalorder %s20, 0
    %p120 = por %p118, %p119
    %s121 = ssub.s32 %s21, %s40
    %p122 = scmp.eq.s32.totalorder %s121, 0
    %s124 = sadd.s32 %s123, 1
    %s125 = scalar_select %p122, %s123, %s124
    %p128 = pneg %p122
    %p129 = scmp.eq.s32.totalorder %s14, 7
    %p130 = por %p128, %p129
    %p131 = scmp.ne.s32.totalorder %s123, %s126
    %p132 = scmp.eq.s32.totalorder %s14, 0
    %p133 = por %p131, %p132
    %p134 = scmp.ne.s32.totalorder %s123, %s126
    %p135 = scmp.eq.s32.totalorder %s19, 7
    %p136 = por %p134, %p135
    %p137 = scmp.ne.s32.totalorder %s126, %s127
    %p138 = scmp.eq.s32.totalorder %s19, 0
    %p139 = por %p137, %p138
    %p140 = scmp.ne.s32.totalorder %s126, %s127
    %p141 = scmp.eq.s32.totalorder %s20, 7
    %p142 = por %p140, %p141
    %p144 = scmp.ne.s32.totalorder %s127, %s143
    %p145 = scmp.eq.s32.totalorder %s20, 0
    %p146 = por %p144, %p145
    %s147 = ssub.s32 %s21, %s40
    %p148 = scmp.eq.s32.totalorder %s147, 0
    %s150 = sadd.s32 %s149, 1
    %s151 = scalar_select %p148, %s149, %s150
    %p154 = pneg %p148
    %p155 = scmp.eq.s32.totalorder %s14, 7
    %p156 = por %p154, %p155
    %p157 = scmp.ne.s32.totalorder %s149, %s152
    %p158 = scmp.eq.s32.totalorder %s14, 0
    %p159 = por %p157, %p158
    %p160 = scmp.ne.s32.totalorder %s149, %s152
    %p161 = scmp.eq.s32.totalorder %s19, 7
    %p162 = por %p160, %p161
    %p163 = scmp.ne.s32.totalorder %s152, %s153
    %p164 = scmp.eq.s32.totalorder %s19, 0
    %p165 = por %p163, %p164
    %p166 = scmp.ne.s32.totalorder %s152, %s153
    %p167 = scmp.eq.s32.totalorder %s20, 7
    %p168 = por %p166, %p167
    %p170 = scmp.ne.s32.totalorder %s153, %s169
    %p171 = scmp.eq.s32.totalorder %s20, 0
    %p172 = por %p170, %p171
    %s173 = ssub.s32 %s21, %s40
    %p174 = scmp.eq.s32.totalorder %s173, 0
    %s176 = sadd.s32 %s175, 1
    %s177 = scalar_select %p174, %s175, %s176
    %p180 = pneg %p174
    %p181 = scmp.eq.s32.totalorder %s14, 7
    %p182 = por %p180, %p181
    %p183 = scmp.ne.s32.totalorder %s175, %s178
    %p184 = scmp.eq.s32.totalorder %s14, 0
    %p185 = por %p183, %p184
    %p186 = scmp.ne.s32.totalorder %s175, %s178
    %p187 = scmp.eq.s32.totalorder %s19, 7
    %p188 = por %p186, %p187
    %p189 = scmp.ne.s32.totalorder %s178, %s179
    %p190 = scmp.eq.s32.totalorder %s19, 0
    %p191 = por %p189, %p190
    %p192 = scmp.ne.s32.totalorder %s178, %s179
    %p193 = scmp.eq.s32.totalorder %s20, 7
    %p194 = por %p192, %p193
    %p196 = scmp.ne.s32.totalorder %s179, %s195
    %p197 = scmp.eq.s32.totalorder %s20, 0
    %p198 = por %p196, %p197
    %s199 = ssub.s32 %s21, %s40
    %p200 = scmp.eq.s32.totalorder %s199, 0
    %s202 = sadd.s32 %s201, 1
    %s203 = scalar_select %p200, %s201, %s202
    %p206 = pneg %p200
    %p207 = scmp.eq.s32.totalorder %s14, 7
    %p208 = por %p206, %p207
    %p209 = scmp.ne.s32.totalorder %s201, %s204
    %p210 = scmp.eq.s32.totalorder %s14, 0
    %p211 = por %p209, %p210
    %p212 = scmp.ne.s32.totalorder %s201, %s204
    %p213 = scmp.eq.s32.totalorder %s19, 7
    %p214 = por %p212, %p213
    %p215 = scmp.ne.s32.totalorder %s204, %s205
    %p216 = scmp.eq.s32.totalorder %s19, 0
    %p217 = por %p215, %p216
    %p218 = scmp.ne.s32.totalorder %s204, %s205
    %p219 = scmp.eq.s32.totalorder %s20, 7
    %p220 = por %p218, %p219
    %p222 = scmp.ne.s32.totalorder %s205, %s221
    %p223 = scmp.eq.s32.totalorder %s20, 0
    %p224 = por %p222, %p223
    %s225 = ssub.s32 %s21, %s40
    %p226 = scmp.eq.s32.totalorder %s225, 0
    %s228 = sadd.s32 %s227, 1
    %s229 = scalar_select %p226, %s227, %s228
    %p232 = pneg %p226
    %p233 = scmp.eq.s32.totalorder %s14, 7
    %p234 = por %p232, %p233
    %p235 = scmp.ne.s32.totalorder %s227, %s230
    %p236 = scmp.eq.s32.totalorder %s14, 0
    %p237 = por %p235, %p236
    %p238 = scmp.ne.s32.totalorder %s227, %s230
    %p239 = scmp.eq.s32.totalorder %s19, 7
    %p240 = por %p238, %p239
    %p241 = scmp.ne.s32.totalorder %s230, %s231
    %p242 = scmp.eq.s32.totalorder %s19, 0
    %p243 = por %p241, %p242
    %p244 = scmp.ne.s32.totalorder %s230, %s231
    %p245 = scmp.eq.s32.totalorder %s20, 7
    %p246 = por %p244, %p245
    %p248 = scmp.ne.s32.totalorder %s231, %s247
    %p249 = scmp.eq.s32.totalorder %s20, 0
    %p250 = por %p248, %p249
    %s251 = ssub.s32 %s21, %s40
    %s252 = ssub.s32 %s22, %s36
    %s253 = sor.u32 %s251, %s252
    %p254 = scmp.eq.s32.totalorder %s253, 0
    %s256 = sadd.s32 %s255, 1
    %s257 = scalar_select %p254, %s255, %s256
    %p260 = pneg %p254
    %p261 = scmp.eq.s32.totalorder %s14, 7
    %p262 = por %p260, %p261
    %p263 = scmp.ne.s32.totalorder %s255, %s258
    %p264 = scmp.eq.s32.totalorder %s14, 0
    %p265 = por %p263, %p264
    %p266 = scmp.ne.s32.totalorder %s255, %s258
    %p267 = scmp.eq.s32.totalorder %s19, 7
    %p268 = por %p266, %p267
    %p269 = scmp.ne.s32.totalorder %s258, %s259
    %p270 = scmp.eq.s32.totalorder %s19, 0
    %p271 = por %p269, %p270
    %p272 = scmp.ne.s32.totalorder %s258, %s259
    %p273 = scmp.eq.s32.totalorder %s20, 7
    %p274 = por %p272, %p273
    %p276 = scmp.ne.s32.totalorder %s259, %s275
    %p277 = scmp.eq.s32.totalorder %s20, 0
    %p278 = por %p276, %p277
    %p279 = scmp.le.s32.totalorder 1, %s14
    %p280 = scmp.lt.s32.totalorder %s14, 9
    %p281 = pnand %p279, %p280
    %p282 = pneg %p281
    // Predicated region
    $region9: #{byol_forward.2} parent=5 // pred_check
      _
    $region10: #{byol_forward.2} parent=5 // pred_check_branch
      %284 = sbr.rel (%p281) target = $region12
    $region11: #{byol_forward.2} parent=5 // pred_region
      %s285 = ssub.s32 %s14, 1
    $region12: #{byol_forward.2} parent=5 // pred_fallthru
      _
    %p286 = scmp.lt.s32.totalorder %s14, 8
    // Predicated region
    $region13: #{byol_forward.2} parent=5 // pred_check
      %p287 = pneg %p286
    $region14: #{byol_forward.2} parent=5 // pred_check_branch
      %289 = sbr.rel (%p287) target = $region16
    $region15: #{byol_forward.2} parent=5 // pred_region
      // Predicated region
      $region17: #{byol_forward.2} parent=15 // pred_check
        %p290 = pneg %p55
      $region18: #{byol_forward.2} parent=15 // pred_check_branch
        %292 = sbr.rel (%p290) target = $region20
      $region19: #{byol_forward.2} parent=15 // pred_region
        %p293 = scmp.lt.s32.totalorder %s22, 1
        %s294 = scalar_select %p293, %s22, 1
        %p295 = scmp.lt.s32.totalorder %s23, 1
        %s296 = scalar_select %p295, %s23, 1
        %s297 = smul.addr %s296, 32
        %s298 = smul.addr %s294, 64
        %s299 = sadd.s32 %s297, %s298
        %s300 = smul.addr %s299, 4
        %s301 = scalar_lea.vmem %s0, %s300
      $region20: #{byol_forward.2} parent=15 // pred_fallthru
        _
      // Predicated region
      $region21: #{byol_forward.2} parent=15 // pred_check
        %p302 = pneg %p81
      $region22: #{byol_forward.2} parent=15 // pred_check_branch
        %304 = sbr.rel (%p302) target = $region24
      $region23: #{byol_forward.2} parent=15 // pred_region
        %p305 = scmp.lt.s32.totalorder %s21, 1
        %s306 = scalar_select %p305, %s21, 1
        %s307 = smul.addr %s306, 4
        %s308 = smul.addr %s307, 4
        %s309 = scalar_lea.vmem %s1, %s308
      $region24: #{byol_forward.2} parent=15 // pred_fallthru
        _
      // Predicated region
      $region25: #{byol_forward.2} parent=15 // pred_check
        %p310 = pneg %p107
      $region26: #{byol_forward.2} parent=15 // pred_check_branch
        %312 = sbr.rel (%p310) target = $region28
      $region27: #{byol_forward.2} parent=15 // pred_region
        %p313 = scmp.lt.s32.totalorder %s21, 1
        %s314 = scalar_select %p313, %s21, 1
        %s315 = smul.addr %s314, 8
        %s316 = smul.addr %s315, 4
        %s317 = scalar_lea.vmem %s2, %s316
      $region28: #{byol_forward.2} parent=15 // pred_fallthru
        _
      // Predicated region
      $region29: #{byol_forward.2} parent=15 // pred_check
        %p318 = pneg %p133
      $region30: #{byol_forward.2} parent=15 // pred_check_branch
        %320 = sbr.rel (%p318) target = $region32
      $region31: #{byol_forward.2} parent=15 // pred_region
        %p321 = scmp.lt.s32.totalorder %s21, 1
        %s322 = scalar_select %p321, %s21, 1
        %s323 = scalar_lea.vmem %s3, %s322
      $region32: #{byol_forward.2} parent=15 // pred_fallthru
        _
      // Predicated region
      $region33: #{byol_forward.2} parent=15 // pred_check
        %p324 = pneg %p159
      $region34: #{byol_forward.2} parent=15 // pred_check_branch
        %326 = sbr.rel (%p324) target = $region36
      $region35: #{byol_forward.2} parent=15 // pred_region
        %p327 = scmp.lt.s32.totalorder %s21, 1
        %s328 = scalar_select %p327, %s21, 1
        %s329 = scalar_lea.vmem %s4, %s328
      $region36: #{byol_forward.2} parent=15 // pred_fallthru
        _
      // Predicated region
      $region37: #{byol_forward.2} parent=15 // pred_check
        %p330 = pneg %p185
      $region38: #{byol_forward.2} parent=15 // pred_check_branch
        %332 = sbr.rel (%p330) target = $region40
      $region39: #{byol_forward.2} parent=15 // pred_region
        %p333 = scmp.lt.s32.totalorder %s21, 1
        %s334 = scalar_select %p333, %s21, 1
        %s335 = scalar_lea.vmem %s5, %s334
      $region40: #{byol_forward.2} parent=15 // pred_fallthru
        _
      // Predicated region
      $region41: #{byol_forward.2} parent=15 // pred_check
        %p336 = pneg %p211
      $region42: #{byol_forward.2} parent=15 // pred_check_branch
        %338 = sbr.rel (%p336) target = $region44
      $region43: #{byol_forward.2} parent=15 // pred_region
        %p339 = scmp.lt.s32.totalorder %s21, 1
        %s340 = scalar_select %p339, %s21, 1
        %s341 = smul.addr %s340, 4
        %s342 = smul.addr %s341, 4
        %s343 = scalar_lea.vmem %s6, %s342
      $region44: #{byol_forward.2} parent=15 // pred_fallthru
        _
      // Predicated region
      $region45: #{byol_forward.2} parent=15 // pred_check
        %p344 = pneg %p237
      $region46: #{byol_forward.2} parent=15 // pred_check_branch
        %346 = sbr.rel (%p344) target = $region48
      $region47: #{byol_forward.2} parent=15 // pred_region
        %p347 = scmp.lt.s32.totalorder %s21, 1
        %s348 = scalar_select %p347, %s21, 1
        %s349 = scalar_lea.vmem %s7, %s348
      $region48: #{byol_forward.2} parent=15 // pred_fallthru
        _
    $region16: #{byol_forward.2} parent=5 // pred_fallthru
      _
    %p350 = scmp.le.s32.totalorder 1, %s14
    %p351 = scmp.lt.s32.totalorder %s14, 9
    %p352 = pnand %p350, %p351
    %p353 = pneg %p352
    // Predicated region
    $region49: #{byol_forward.2} parent=5 // pred_check
      _
    $region50: #{byol_forward.2} parent=5 // pred_check_branch
      %355 = sbr.rel (%p352) target = $region52
    $region51: #{byol_forward.2} parent=5 // pred_region
      %s356 = ssub.s32 %s14, 1
      %p357 = scmp.lt.s32.totalorder %s25, 1
      %s358 = scalar_select %p357, %s25, 1
      %p359 = scmp.lt.s32.totalorder %s26, 1
      %s360 = scalar_select %p359, %s26, 1
      %s361 = smul.addr %s360, 32
      %s362 = smul.addr %s358, 64
      %s363 = sadd.s32 %s361, %s362
      %s364 = smul.addr %s363, 4
      %s365 = scalar_lea.vmem %s0, %s364
      %p366 = pneg %p61
      %p367 = pneg %p58
      %p368 = scmp.lt.s32.totalorder %s24, 1
      %s369 = scalar_select %p368, %s24, 1
      %s370 = smul.addr %s369, 4
      %s371 = smul.addr %s370, 4
      %s372 = scalar_lea.vmem %s1, %s371
      %p373 = pneg %p87
      %p374 = pneg %p84
      %p375 = scmp.lt.s32.totalorder %s24, 1
      %s376 = scalar_select %p375, %s24, 1
      %s377 = smul.addr %s376, 8
      %s378 = smul.addr %s377, 4
      %s379 = scalar_lea.vmem %s2, %s378
      %p380 = pneg %p113
      %p381 = pneg %p110
      %p382 = scmp.lt.s32.totalorder %s24, 1
      %s383 = scalar_select %p382, %s24, 1
      %s384 = scalar_lea.vmem %s3, %s383
      %p385 = pneg %p139
      %p386 = pneg %p136
      %p387 = scmp.lt.s32.totalorder %s24, 1
      %s388 = scalar_select %p387, %s24, 1
      %s389 = scalar_lea.vmem %s4, %s388
      %p390 = pneg %p165
      %p391 = pneg %p162
      %p392 = scmp.lt.s32.totalorder %s24, 1
      %s393 = scalar_select %p392, %s24, 1
      %s394 = scalar_lea.vmem %s5, %s393
      %p395 = pneg %p191
      %p396 = pneg %p188
      %p397 = scmp.lt.s32.totalorder %s24, 1
      %s398 = scalar_select %p397, %s24, 1
      %s399 = smul.addr %s398, 4
      %s400 = smul.addr %s399, 4
      %s401 = scalar_lea.vmem %s6, %s400
      %p402 = pneg %p217
      %p403 = pneg %p214
      %p404 = scmp.lt.s32.totalorder %s24, 1
      %s405 = scalar_select %p404, %s24, 1
      %s406 = scalar_lea.vmem %s7, %s405
      %p407 = pneg %p243
      %p408 = pneg %p240
      %p409 = pneg %p271
      %p410 = pneg %p268
      %p411 = scmp.lt.s32.totalorder %s24, 1
      %s412 = scalar_select %p411, %s24, 1
      %p413 = scmp.lt.s32.totalorder %s25, 1
      %s414 = scalar_select %p413, %s25, 1
      %s415 = smul.addr %s412, 2
      %s416 = sadd.s32 %s414, %s415
      %s417 = smul.addr %s416, 2
      %s418 = scalar_lea.vmem %s8, %s417
      %p419 = scmp.lt.s32.totalorder %s25, 1
      %s420 = scalar_select %p419, %s25, 1
      %p421 = scmp.lt.s32.totalorder %s26, 1
      %s422 = scalar_select %p421, %s26, 1
      %s423 = smul.addr %s422, 32
      %s424 = smul.addr %s420, 64
      %s425 = sadd.s32 %s423, %s424
      %s426 = smul.addr %s425, 4
      %s427 = scalar_lea.vmem %s0, %s426
      %p428 = scmp.lt.s32.totalorder %s24, 1
      %s429 = scalar_select %p428, %s24, 1
      %s430 = smul.addr %s429, 4
      %s431 = smul.addr %s430, 4
      %s432 = scalar_lea.vmem %s1, %s431
      %p433 = scmp.lt.s32.totalorder %s24, 1
      %s434 = scalar_select %p433, %s24, 1
      %s435 = smul.addr %s434, 8
      %s436 = smul.addr %s435, 4
      %s437 = scalar_lea.vmem %s2, %s436
      %p438 = scmp.lt.s32.totalorder %s24, 1
      %s439 = scalar_select %p438, %s24, 1
      %s440 = scalar_lea.vmem %s3, %s439
      %p441 = scmp.lt.s32.totalorder %s24, 1
      %s442 = scalar_select %p441, %s24, 1
      %s443 = scalar_lea.vmem %s4, %s442
      %p444 = scmp.lt.s32.totalorder %s24, 1
      %s445 = scalar_select %p444, %s24, 1
      %s446 = scalar_lea.vmem %s5, %s445
      %p447 = scmp.lt.s32.totalorder %s24, 1
      %s448 = scalar_select %p447, %s24, 1
      %s449 = smul.addr %s448, 4
      %s450 = smul.addr %s449, 4
      %s451 = scalar_lea.vmem %s6, %s450
      %p452 = scmp.lt.s32.totalorder %s24, 1
      %s453 = scalar_select %p452, %s24, 1
      %s454 = scalar_lea.vmem %s7, %s453
      %p455 = scmp.lt.s32.totalorder %s24, 1
      %s456 = scalar_select %p455, %s24, 1
      %p457 = scmp.lt.s32.totalorder %s25, 1
      %s458 = scalar_select %p457, %s25, 1
      %s459 = smul.addr %s456, 2
      %s460 = sadd.s32 %s458, %s459
      %s461 = smul.addr %s460, 2
      %s462 = scalar_lea.vmem %s8, %s461
      %v464 = vld [vmem:[%s427] sm:$0xf]
      %v465 = vld [vmem:[%s427 + $0x4] sm:$0xf]
      %v466 = vld [vmem:[%s427 + $0x8] sm:$0xf]
      %v467 = vld [vmem:[%s427 + $0xc] sm:$0xf]
      %v468 = vld [vmem:[%s427 + $0x10] sm:$0xf]
      %v469 = vld [vmem:[%s427 + $0x14] sm:$0xf]
      %v470 = vld [vmem:[%s427 + $0x18] sm:$0xf]
      %v471 = vld [vmem:[%s427 + $0x1c] sm:$0xf]
      %v472 = vld [vmem:[%s427 + $0x20] sm:$0xf]
      %v473 = vld [vmem:[%s427 + $0x24] sm:$0xf]
      %v474 = vld [vmem:[%s427 + $0x28] sm:$0xf]
      %v475 = vld [vmem:[%s427 + $0x2c] sm:$0xf]
      %v476 = vld [vmem:[%s427 + $0x30] sm:$0xf]
      %v477 = vld [vmem:[%s427 + $0x34] sm:$0xf]
      %v478 = vld [vmem:[%s427 + $0x38] sm:$0xf]
      %v479 = vld [vmem:[%s427 + $0x3c] sm:$0xf]
      %v480 = vld [vmem:[%s427 + $0x40] sm:$0xf]
      %v481 = vld [vmem:[%s427 + $0x44] sm:$0xf]
      %v482 = vld [vmem:[%s427 + $0x48] sm:$0xf]
      %v483 = vld [vmem:[%s427 + $0x4c] sm:$0xf]
      %v484 = vld [vmem:[%s427 + $0x50] sm:$0xf]
      %v485 = vld [vmem:[%s427 + $0x54] sm:$0xf]
      %v486 = vld [vmem:[%s427 + $0x58] sm:$0xf]
      %v487 = vld [vmem:[%s427 + $0x5c] sm:$0xf]
      %v488 = vld [vmem:[%s427 + $0x60] sm:$0xf]
      %v489 = vld [vmem:[%s427 + $0x64] sm:$0xf]
      %v490 = vld [vmem:[%s427 + $0x68] sm:$0xf]
      %v491 = vld [vmem:[%s427 + $0x6c] sm:$0xf]
      %v492 = vld [vmem:[%s427 + $0x70] sm:$0xf]
      %v493 = vld [vmem:[%s427 + $0x74] sm:$0xf]
      %v494 = vld [vmem:[%s427 + $0x78] sm:$0xf]
      %v495 = vld [vmem:[%s427 + $0x7c] sm:$0xf]
      %v496 = vld [vmem:[%s432] sm:$0xf]
      %v497 = vld [vmem:[%s432 + $0x4] sm:$0xf]
      %v498 = vld [vmem:[%s432 + $0x8] sm:$0xf]
      %v499 = vld [vmem:[%s432 + $0xc] sm:$0x3]
      %v532 = vunpack.c.l.b16 %v464
      %v533 = vunpack.c.l.b16 %v465
      %v534 = vunpack.c.l.b16 %v466
      %v535 = vunpack.c.l.b16 %v467
      %v536 = vunpack.c.l.b16 %v468
      %v537 = vunpack.c.l.b16 %v469
      %v538 = vunpack.c.l.b16 %v470
      %v539 = vunpack.c.l.b16 %v471
      %v540 = vunpack.c.l.b16 %v472
      %v541 = vunpack.c.l.b16 %v473
      %v542 = vunpack.c.l.b16 %v474
      %v543 = vunpack.c.l.b16 %v475
      %v544 = vunpack.c.l.b16 %v476
      %v545 = vunpack.c.l.b16 %v477
      %v546 = vunpack.c.l.b16 %v478
      %v547 = vunpack.c.l.b16 %v479
      %v548 = vunpack.c.l.b16 %v480
      %v549 = vunpack.c.l.b16 %v481
      %v550 = vunpack.c.l.b16 %v482
      %v551 = vunpack.c.l.b16 %v483
      %v552 = vunpack.c.l.b16 %v484
      %v553 = vunpack.c.l.b16 %v485
      %v554 = vunpack.c.l.b16 %v486
      %v555 = vunpack.c.l.b16 %v487
      %v556 = vunpack.c.l.b16 %v488
      %v557 = vunpack.c.l.b16 %v489
      %v558 = vunpack.c.l.b16 %v490
      %v559 = vunpack.c.l.b16 %v491
      %v560 = vunpack.c.l.b16 %v492
      %v561 = vunpack.c.l.b16 %v493
      %v562 = vunpack.c.l.b16 %v494
      %v563 = vunpack.c.l.b16 %v495
      %v564 = vpack.c.b16 %v533, %v532
      %v565 = vpack.c.b16 %v535, %v534
      %v566 = vpack.c.b16 %v537, %v536
      %v567 = vpack.c.b16 %v539, %v538
      %v568 = vpack.c.b16 %v541, %v540
      %v569 = vpack.c.b16 %v543, %v542
      %v570 = vpack.c.b16 %v545, %v544
      %v571 = vpack.c.b16 %v547, %v546
      %v572 = vpack.c.b16 %v549, %v548
      %v573 = vpack.c.b16 %v551, %v550
      %v574 = vpack.c.b16 %v553, %v552
      %v575 = vpack.c.b16 %v555, %v554
      %v576 = vpack.c.b16 %v557, %v556
      %v577 = vpack.c.b16 %v559, %v558
      %v578 = vpack.c.b16 %v561, %v560
      %v579 = vpack.c.b16 %v563, %v562
      %v584 = vunpack.c.l.b16 %v496
      %v585 = vunpack.c.l.b16 %v497
      %v586 = vunpack.c.l.b16 %v498
      %v587 = vunpack.c.l.b16 %v499
      %v588 = vpack.c.b16 %v585, %v584
      %v589 = vpack.c.b16 %v587, %v586
      %vm591 = vcmask 220160
      %v593 = vsel %vm591, %v564, 0
      %v596 = vsel %vm591, %v565, 0
      %v599 = vsel %vm591, %v566, 0
      %v602 = vsel %vm591, %v567, 0
      %v605 = vsel %vm591, %v568, 0
      %v608 = vsel %vm591, %v569, 0
      %v611 = vsel %vm591, %v570, 0
      %v614 = vsel %vm591, %v571, 0
      %v617 = vsel %vm591, %v572, 0
      %v620 = vsel %vm591, %v573, 0
      %v623 = vsel %vm591, %v574, 0
      %v626 = vsel %vm591, %v575, 0
      %v629 = vsel %vm591, %v576, 0
      %v632 = vsel %vm591, %v577, 0
      %v635 = vsel %vm591, %v578, 0
      %v638 = vsel %vm591, %v579, 0
      %vm640 = vcmask 1044480
      %vm641 = vcmask 1045504
      %v642 = vsel %vm640, 4294967295, 65535
      %v643 = vsel %vm641, %v642, 0
      %v645 = vand.u32 %v589, %v643
      %647 = vmatpush.bf16.msra.mxu0 0
      %648 = vmatpush.bf16.msra.mxu0 0
      %649 = vmatpush.bf16.msra.mxu0 0
      %650 = vmatpush.bf16.msra.mxu0 0
      %651 = vmatpush.bf16.msra.mxu0 0
      %652 = vmatpush.bf16.msra.mxu0 0
      %653 = vmatpush.bf16.msra.mxu0 %v645
      %654 = vmatpush.bf16.msra.mxu0 %v588
      %655 = vmatmul.bf16.gmra.mxu0 %v593
      %v656 = vpop.f32.mrf.mxu0
      %v657 = vadd.f32 0.0, %v656
      %v658 = vpop.f32.mrf.mxu0
      %v659 = vadd.f32 0.0, %v658
      %660 = vmatmul.bf16.gmra.mxu0 %v596
      %v661 = vpop.f32.mrf.mxu0
      %v662 = vadd.f32 0.0, %v661
      %v663 = vpop.f32.mrf.mxu0
      %v664 = vadd.f32 0.0, %v663
      %665 = vmatmul.bf16.gmra.mxu0 %v599
      %v666 = vpop.f32.mrf.mxu0
      %v667 = vadd.f32 0.0, %v666
      %v668 = vpop.f32.mrf.mxu0
      %v669 = vadd.f32 0.0, %v668
      %670 = vmatmul.bf16.gmra.mxu0 %v602
      %v671 = vpop.f32.mrf.mxu0
      %v672 = vadd.f32 0.0, %v671
      %v673 = vpop.f32.mrf.mxu0
      %v674 = vadd.f32 0.0, %v673
      %675 = vmatmul.bf16.gmra.mxu0 %v605
      %v676 = vpop.f32.mrf.mxu0
      %v677 = vadd.f32 0.0, %v676
      %v678 = vpop.f32.mrf.mxu0
      %v679 = vadd.f32 0.0, %v678
      %680 = vmatmul.bf16.gmra.mxu0 %v608
      %v681 = vpop.f32.mrf.mxu0
      %v682 = vadd.f32 0.0, %v681
      %v683 = vpop.f32.mrf.mxu0
      %v684 = vadd.f32 0.0, %v683
      %685 = vmatmul.bf16.gmra.mxu0 %v611
      %v686 = vpop.f32.mrf.mxu0
      %v687 = vadd.f32 0.0, %v686
      %v688 = vpop.f32.mrf.mxu0
      %v689 = vadd.f32 0.0, %v688
      %690 = vmatmul.bf16.gmra.mxu0 %v614
      %v691 = vpop.f32.mrf.mxu0
      %v692 = vadd.f32 0.0, %v691
      %v693 = vpop.f32.mrf.mxu0
      %v694 = vadd.f32 0.0, %v693
      %695 = vmatmul.bf16.gmra.mxu0 %v617
      %v696 = vpop.f32.mrf.mxu0
      %v697 = vadd.f32 0.0, %v696
      %v698 = vpop.f32.mrf.mxu0
      %v699 = vadd.f32 0.0, %v698
      %700 = vmatmul.bf16.gmra.mxu0 %v620
      %v701 = vpop.f32.mrf.mxu0
      %v702 = vadd.f32 0.0, %v701
      %v703 = vpop.f32.mrf.mxu0
      %v704 = vadd.f32 0.0, %v703
      %705 = vmatmul.bf16.gmra.mxu0 %v623
      %v706 = vpop.f32.mrf.mxu0
      %v707 = vadd.f32 0.0, %v706
      %v708 = vpop.f32.mrf.mxu0
      %v709 = vadd.f32 0.0, %v708
      %710 = vmatmul.bf16.gmra.mxu0 %v626
      %v711 = vpop.f32.mrf.mxu0
      %v712 = vadd.f32 0.0, %v711
      %v713 = vpop.f32.mrf.mxu0
      %v714 = vadd.f32 0.0, %v713
      %715 = vmatmul.bf16.gmra.mxu0 %v629
      %v716 = vpop.f32.mrf.mxu0
      %v717 = vadd.f32 0.0, %v716
      %v718 = vpop.f32.mrf.mxu0
      %v719 = vadd.f32 0.0, %v718
      %720 = vmatmul.bf16.gmra.mxu0 %v632
      %v721 = vpop.f32.mrf.mxu0
      %v722 = vadd.f32 0.0, %v721
      %v723 = vpop.f32.mrf.mxu0
      %v724 = vadd.f32 0.0, %v723
      %725 = vmatmul.bf16.gmra.mxu0 %v635
      %v726 = vpop.f32.mrf.mxu0
      %v727 = vadd.f32 0.0, %v726
      %v728 = vpop.f32.mrf.mxu0
      %v729 = vadd.f32 0.0, %v728
      %730 = vmatmul.bf16.gmra.mxu0 %v638
      %v731 = vpop.f32.mrf.mxu0
      %v732 = vadd.f32 0.0, %v731
      %v733 = vpop.f32.mrf.mxu0
      %v734 = vadd.f32 0.0, %v733
      %735 = vdwg.mxu0
      %v736 = vmax.f32 %v657, 0.0
      %v737 = vmax.f32 %v659, 0.0
      %v738 = vmax.f32 %v662, 0.0
      %v739 = vmax.f32 %v664, 0.0
      %v740 = vmax.f32 %v667, 0.0
      %v741 = vmax.f32 %v669, 0.0
      %v742 = vmax.f32 %v672, 0.0
      %v743 = vmax.f32 %v674, 0.0
      %v744 = vmax.f32 %v677, 0.0
      %v745 = vmax.f32 %v679, 0.0
      %v746 = vmax.f32 %v682, 0.0
      %v747 = vmax.f32 %v684, 0.0
      %v748 = vmax.f32 %v687, 0.0
      %v749 = vmax.f32 %v689, 0.0
      %v750 = vmax.f32 %v692, 0.0
      %v751 = vmax.f32 %v694, 0.0
      %v752 = vmax.f32 %v697, 0.0
      %v753 = vmax.f32 %v699, 0.0
      %v754 = vmax.f32 %v702, 0.0
      %v755 = vmax.f32 %v704, 0.0
      %v756 = vmax.f32 %v707, 0.0
      %v757 = vmax.f32 %v709, 0.0
      %v758 = vmax.f32 %v712, 0.0
      %v759 = vmax.f32 %v714, 0.0
      %v760 = vmax.f32 %v717, 0.0
      %v761 = vmax.f32 %v719, 0.0
      %v762 = vmax.f32 %v722, 0.0
      %v763 = vmax.f32 %v724, 0.0
      %v764 = vmax.f32 %v727, 0.0
      %v765 = vmax.f32 %v729, 0.0
      %v766 = vmax.f32 %v732, 0.0
      %v767 = vmax.f32 %v734, 0.0
      %vm768 = vcmask 523264
      %v769 = vsel %vm768, %v736, 0.0
      %v770 = vsel %vm768, %v737, 0.0
      %v771 = vadd.f32 %v769, %v770
      %v772 = vsel %vm768, %v738, 0.0
      %v773 = vadd.f32 %v771, %v772
      %v774 = vsel %vm768, %v739, 0.0
      %v775 = vadd.f32 %v773, %v774
      %v776 = vsel %vm768, %v740, 0.0
      %v777 = vadd.f32 %v775, %v776
      %v778 = vsel %vm768, %v741, 0.0
      %v779 = vadd.f32 %v777, %v778
      %v780 = vsel %vm768, %v742, 0.0
      %v781 = vadd.f32 %v779, %v780
      %v782 = vsel %vm768, %v743, 0.0
      %v783 = vadd.f32 %v781, %v782
      %v784 = vsel %vm768, %v744, 0.0
      %v785 = vadd.f32 %v783, %v784
      %v786 = vsel %vm768, %v745, 0.0
      %v787 = vadd.f32 %v785, %v786
      %v788 = vsel %vm768, %v746, 0.0
      %v789 = vadd.f32 %v787, %v788
      %v790 = vsel %vm768, %v747, 0.0
      %v791 = vadd.f32 %v789, %v790
      %v792 = vsel %vm768, %v748, 0.0
      %v793 = vadd.f32 %v791, %v792
      %v794 = vsel %vm768, %v749, 0.0
      %v795 = vadd.f32 %v793, %v794
      %v796 = vsel %vm768, %v750, 0.0
      %v797 = vadd.f32 %v795, %v796
      %v798 = vsel %vm768, %v751, 0.0
      %v799 = vadd.f32 %v797, %v798
      %v800 = vsel %vm768, %v752, 0.0
      %v801 = vadd.f32 %v799, %v800
      %v802 = vsel %vm768, %v753, 0.0
      %v803 = vadd.f32 %v801, %v802
      %v804 = vsel %vm768, %v754, 0.0
      %v805 = vadd.f32 %v803, %v804
      %v806 = vsel %vm768, %v755, 0.0
      %v807 = vadd.f32 %v805, %v806
      %v808 = vsel %vm768, %v756, 0.0
      %v809 = vadd.f32 %v807, %v808
      %v810 = vsel %vm768, %v757, 0.0
      %v811 = vadd.f32 %v809, %v810
      %v812 = vsel %vm768, %v758, 0.0
      %v813 = vadd.f32 %v811, %v812
      %v814 = vsel %vm768, %v759, 0.0
      %v815 = vadd.f32 %v813, %v814
      %v816 = vsel %vm768, %v760, 0.0
      %v817 = vadd.f32 %v815, %v816
      %v818 = vsel %vm768, %v761, 0.0
      %v819 = vadd.f32 %v817, %v818
      %v820 = vsel %vm768, %v762, 0.0
      %v821 = vadd.f32 %v819, %v820
      %v822 = vsel %vm768, %v763, 0.0
      %v823 = vadd.f32 %v821, %v822
      %v824 = vsel %vm768, %v764, 0.0
      %v825 = vadd.f32 %v823, %v824
      %v826 = vsel %vm768, %v765, 0.0
      %v827 = vadd.f32 %v825, %v826
      %v828 = vsel %vm768, %v766, 0.0
      %v829 = vadd.f32 %v827, %v828
      %v830 = vsel %vm768, %v767, 0.0
      %v831 = vadd.f32 %v829, %v830
      %v832 = vrot.slane %v831, 4
      %v833 = vadd.f32 %v831, %v832
      %v834 = vrot.slane %v833, 2
      %v835 = vadd.f32 %v833, %v834
      %v836 = vrot.slane %v835, 1
      %v837 = vadd.f32 %v835, %v836
      %v838 = vrcp.pop 256.0
      %v839 = vmul.f32 256.0, %v838
      %v840 = vsub.f32 1.0, %v839
      %v841 = vmul.f32 %v838, %v840
      %v842 = vadd.f32 %v838, %v841
      %vm843 = vweird.f32 %v838
      %v844 = vsel %vm843, %v838, %v842
      %v845 = vmul.f32 %v837, %v844
      %p846 = scmp.eq.s32.totalorder %s26, 0
      // Predicated region
      $region53: #{byol_forward.2} parent=51 // pred_check
        %p847 = pneg %p846
      $region54: #{byol_forward.2} parent=51 // pred_check_branch
        %849 = sbr.rel (%p847) target = $region56
      $region55: #{byol_forward.2} parent=51 // pred_region
        %vm850 = vcmask 517120
        %851 = vst.msk [vmem:[#allocation2] sm:$0x3] %vm850, 0.0
      $region56: #{byol_forward.2} parent=51 // pred_fallthru
        _
      %v852 = vlaneseq
      %v853 = vshrl.u32 %v852, 7
      %v854 = vstv %s26
      %vm855 = vcmp.eq.s32.totalorder %v853, %v854
      %v856 = vld [vmem:[#allocation2] sm:$0x3]
      %v857 = vsel %vm855, 1, 0
      %vm858 = vcmp.eq.s32.totalorder %v857, 1
      %v859 = vsel %vm858, %v845, %v856
      %vm860 = vcmask 517120
      %861 = vst.msk [vmem:[#allocation2] sm:$0x3] %vm860, %v859
      %p862 = scmp.eq.s32.totalorder %s26, 1
      // Predicated region
      $region57: #{byol_forward.2} parent=51 // pred_check
        %p863 = pneg %p862
      $region58: #{byol_forward.2} parent=51 // pred_check_branch
        %865 = sbr.rel (%p863) target = $region60
      $region59: #{byol_forward.2} parent=51 // pred_region
        %v866 = vld [vmem:[#allocation2] sm:$0x3]
        %v867 = vpack.c.bf16 %v866, %v866
        %v868 = vld [vmem:[%s437] sm:$0xf]
        %v869 = vld [vmem:[%s437 + $0x4] sm:$0xf]
        %v870 = vld [vmem:[%s437 + $0x8] sm:$0xf]
        %v871 = vld [vmem:[%s437 + $0xc] sm:$0xf]
        %v872 = vld [vmem:[%s437 + $0x10] sm:$0xf]
        %v873 = vld [vmem:[%s437 + $0x14] sm:$0xf]
        %v874 = vld [vmem:[%s437 + $0x18] sm:$0xf]
        %v875 = vld [vmem:[%s437 + $0x1c] sm:$0xf]
        %v876 = vld [vmem:[%s440] sm:$0x1]
        %v878 = vperm.slane %v876, 0
        %v888 = vunpack.c.l.b16 %v868
        %v889 = vunpack.c.l.b16 %v869
        %v890 = vunpack.c.l.b16 %v870
        %v891 = vunpack.c.l.b16 %v871
        %v892 = vunpack.c.l.b16 %v872
        %v893 = vunpack.c.l.b16 %v873
        %v894 = vunpack.c.l.b16 %v874
        %v895 = vunpack.c.l.b16 %v875
        %v896 = vpack.c.b16 %v889, %v888
        %v897 = vpack.c.b16 %v891, %v890
        %v898 = vpack.c.b16 %v893, %v892
        %v899 = vpack.c.b16 %v895, %v894
        %v905 = vsel %vm768, %v867, 0
        %907 = vmatpush.bf16.msra.mxu0 0
        %908 = vmatpush.bf16.msra.mxu0 0
        %909 = vmatpush.bf16.msra.mxu0 0
        %910 = vmatpush.bf16.msra.mxu0 0
        %911 = vmatpush.bf16.msra.mxu0 %v899
        %912 = vmatpush.bf16.msra.mxu0 %v898
        %913 = vmatpush.bf16.msra.mxu0 %v897
        %914 = vmatpush.bf16.msra.mxu0 %v896
        %915 = vmatmul.bf16.gmra.mxu0 %v905
        %v916 = vpop.f32.mrf.mxu0
        %v917 = vadd.f32 %v878, %v916
        %v918 = vpop.f32.mrf.mxu0
        %919 = vdwg.mxu0
        %vm920 = vcmask 254976
        %v921 = vsel %vm920, %v917, 0.0
        %v922 = vrot.slane %v921, 4
        %v923 = vadd.f32 %v921, %v922
        %v924 = vrot.slane %v923, 2
        %v925 = vadd.f32 %v923, %v924
        %v926 = vrot.slane %v925, 1
        %v927 = vadd.f32 %v925, %v926
        %v928 = vrcp.pop 2.0
        %v929 = vmul.f32 2.0, %v928
        %v930 = vsub.f32 1.0, %v929
        %v931 = vmul.f32 %v928, %v930
        %v932 = vadd.f32 %v928, %v931
        %vm933 = vweird.f32 %v928
        %v934 = vsel %vm933, %v928, %v932
        %v935 = vmul.f32 %v927, %v934
        %v936 = vsub.f32 %v917, %v935
        %v937 = vmul.f32 %v936, %v936
        %v938 = vsel %vm920, %v937, 0.0
        %v939 = vrot.slane %v938, 4
        %v940 = vadd.f32 %v938, %v939
        %v941 = vrot.slane %v940, 2
        %v942 = vadd.f32 %v940, %v941
        %v943 = vrot.slane %v942, 1
        %v944 = vadd.f32 %v942, %v943
        %v945 = vmul.f32 %v944, %v934
        %v946 = vadd.f32 %v945, 1e-05
        %v947 = vrsqrt.pop %v946
        %v948 = vmul.f32 %v947, %v946
        %v949 = vmul.f32 %v948, %v947
        %v950 = vmul.f32 0.5, %v949
        %v951 = vsub.f32 1.5, %v950
        %v952 = vmul.f32 %v947, %v951
        %vm953 = vweird.f32 %v946
        %vm954 = vweird.f32 %v947
        %vm955 = vmor %vm953, %vm954
        %v956 = vsel %vm955, %v947, %v952
        %v957 = vmul.f32 %v936, %v956
        %v958 = vld [vmem:[%s443] sm:$0x1]
        %v960 = vperm.slane %v958, 0
        %v962 = vmul.f32 %v957, %v960
        %v963 = vld [vmem:[%s446] sm:$0x1]
        %v965 = vperm.slane %v963, 0
        %v967 = vadd.f32 %v962, %v965
        %v968 = vmax.f32 %v967, 0.0
        %v969 = vpack.c.bf16 %v968, %v968
        %v970 = vld [vmem:[%s451] sm:$0xf]
        %v971 = vld [vmem:[%s451 + $0x4] sm:$0xf]
        %v972 = vld [vmem:[%s451 + $0x8] sm:$0xf]
        %v973 = vld [vmem:[%s451 + $0xc] sm:$0xf]
        %v974 = vld [vmem:[%s454] sm:$0x1]
        %v976 = vperm.slane %v974, 0
        %v982 = vunpack.c.l.b16 %v970
        %v983 = vunpack.c.l.b16 %v971
        %v984 = vunpack.c.l.b16 %v972
        %v985 = vunpack.c.l.b16 %v973
        %v986 = vpack.c.b16 %v983, %v982
        %v987 = vpack.c.b16 %v985, %v984
        %vm990 = vcmask 261120
        %v992 = vsel %vm990, %v969, 0
        %994 = vmatpush.bf16.msra.mxu0 0
        %995 = vmatpush.bf16.msra.mxu0 0
        %996 = vmatpush.bf16.msra.mxu0 0
        %997 = vmatpush.bf16.msra.mxu0 0
        %998 = vmatpush.bf16.msra.mxu0 0
        %999 = vmatpush.bf16.msra.mxu0 0
        %1000 = vmatpush.bf16.msra.mxu0 %v987
        %1001 = vmatpush.bf16.msra.mxu0 %v986
        %1002 = vmatmul.bf16.gmra.mxu0 %v992
        %v1003 = vpop.f32.mrf.mxu0
        %v1004 = vadd.f32 %v976, %v1003
        %v1005 = vpop.f32.mrf.mxu0
        %1006 = vdwg.mxu0
        %vm1007 = vcmask 123904
        %1008 = vst.msk [vmem:[%s462] sm:$0x3] %vm1007, %v1004
      $region60: #{byol_forward.2} parent=51 // pred_fallthru
        _
      %p1009 = scmp.lt.s32.totalorder %s24, 1
      %s1010 = scalar_select %p1009, %s24, 1
      %p1011 = scmp.lt.s32.totalorder %s25, 1
      %s1012 = scalar_select %p1011, %s25, 1
      %s1013 = smul.addr %s1010, 2
      %s1014 = sadd.s32 %s1012, %s1013
      %s1015 = smul.addr %s1014, 2
      %s1016 = scalar_lea.vmem %s8, %s1015
      // Predicated region
      $region61: #{byol_forward.2} parent=51 // pred_check
        %p1017 = pneg %p268
      $region62: #{byol_forward.2} parent=51 // pred_check_branch
        %1019 = sbr.rel (%p1017) target = $region64
      $region63: #{byol_forward.2} parent=51 // pred_region
        _
      $region64: #{byol_forward.2} parent=51 // pred_fallthru
        _
    $region52: #{byol_forward.2} parent=5 // pred_fallthru
      _
    %p1020 = scmp.le.s32.totalorder 2, %s14
    // Predicated region
    $region65: #{byol_forward.2} parent=5 // pred_check
      %p1021 = pneg %p1020
    $region66: #{byol_forward.2} parent=5 // pred_check_branch
      %1023 = sbr.rel (%p1021) target = $region68
    $region67: #{byol_forward.2} parent=5 // pred_region
      %s1024 = ssub.s32 %s14, 2
      // Predicated region
      $region69: #{byol_forward.2} parent=67 // pred_check
        %p1025 = pneg %p274
      $region70: #{byol_forward.2} parent=67 // pred_check_branch
        %1027 = sbr.rel (%p1025) target = $region72
      $region71: #{byol_forward.2} parent=67 // pred_region
        %p1028 = scmp.lt.s32.totalorder %s27, 1
        %s1029 = scalar_select %p1028, %s27, 1
        %p1030 = scmp.lt.s32.totalorder %s28, 1
        %s1031 = scalar_select %p1030, %s28, 1
        %s1032 = smul.addr %s1029, 2
        %s1033 = sadd.s32 %s1031, %s1032
        %s1034 = smul.addr %s1033, 2
        %s1035 = scalar_lea.vmem %s8, %s1034
      $region72: #{byol_forward.2} parent=67 // pred_fallthru
        _
    $region68: #{byol_forward.2} parent=5 // pred_fallthru
      _
  $region6: #{byol_forward.2} parent=0 // loop_footer
    %s18 = sadd.s32 1, %s14
  $region7: #{byol_forward.2} parent=0 // loop_footer_branch
    %13 = sbr.rel target = $region3
  $region8: #{byol_forward.2} parent=0 // loop_exit
    _

</llo_original>
